<compile_context>
chip_gen: v6e
topology: v6e:2x2x1
jax: 0.10.0
libtpu: 0.0.40
codegen_flags: <defaults>
</compile_context>

<pallas_src>
import functools

import jax
import jax.numpy as jnp
import numpy as np
from jax.experimental import pallas as pl
from jax.experimental.pallas import tpu as pltpu


# ----------------------------------------------------------------------------
# Pallas kernel: one graph block (GB graphs x npg padded nodes) per grid step.
# ----------------------------------------------------------------------------
def sr_gnn_attn_kernel(P_ref, x_ref, A_ref, Sel_ref, Mask_ref, out_ref, *,
                       hidden_dim, din_pad, items_pad, num_iterations,
                       graphs_per_block, nodes_per_graph):
  f32 = jnp.float32
  bf16 = jnp.bfloat16
  H = hidden_dim
  gb, npg = graphs_per_block, nodes_per_graph

  # ---- static slices of the packed parameter buffer -------------------------
  r1 = din_pad               # end of Wmsg rows
  r2 = r1 + 2 * H            # end of fused gate-weight rows
  r3 = r2 + H                # end of Watt rows
  rb = r3 + H                # end of Wfc rows / start of bias rows

  Wmsg = P_ref[0:r1, 0:H].astype(bf16)            # (din_pad, H)
  Wgate = P_ref[r1:r2, 0:4 * H].astype(bf16)      # (2H,4H)=[[Wir|Wiz|Win|0],[Whr|Whz|0|Whn]]
  Watt = P_ref[r2:r3, 0:H].astype(bf16)           # (H, H)
  Wfc = P_ref[r3:rb, 0:items_pad]                 # (H, items_pad) f32 (tiny final matmul)
  bmsg = P_ref[rb + 0:rb + 1, 0:H]
  bgate = P_ref[rb + 1:rb + 2, 0:4 * H]           # [bir+bhr | biz+bhz | bin | bhn]
  batt = P_ref[rb + 2:rb + 3, 0:H]
  wsc = P_ref[rb + 3:rb + 4, 0:H]                 # attention_score_fc weight row
  bsc = P_ref[rb + 4:rb + 5, 0:1]
  bfc = P_ref[rb + 5:rb + 6, 0:items_pad]

  x = x_ref[...]                                  # (NB, din_pad) bf16
  A = A_ref[...]                                  # (NB, NB) bf16, row-normalized (aggr='mean')

  # ---- GRUGraphLayer: message_linear ----------------------------------------
  h0 = jnp.dot(x, Wmsg, preferred_element_type=f32) + bmsg            # (NB, H) f32

  # ---- GRU iterations: A@h (mean aggregation) + ONE fused gate matmul -------
  def gru_step(_, h):
    m = jnp.dot(A, h.astype(bf16), preferred_element_type=f32)        # (NB, H)
    mh = jnp.concatenate([m, h], axis=1).astype(bf16)                 # (NB, 2H)
    g = jnp.dot(mh, Wgate, preferred_element_type=f32) + bgate        # (NB, 4H=128)
    r = jax.nn.sigmoid(g[:, 0:H])
    z = jax.nn.sigmoid(g[:, H:2 * H])
    n = jnp.tanh(g[:, 2 * H:3 * H] + r * g[:, 3 * H:4 * H])
    return (1.0 - z) * n + z * h                                      # f32 elementwise

  h = jax.lax.fori_loop(0, num_iterations, gru_step, h0,
                        unroll=num_iterations <= 3)

  # ---- attention mechanism ---------------------------------------------------
  lt = jnp.dot(h.astype(bf16), Watt, preferred_element_type=f32) + batt   # (NB, H)
  # last_lt[g] = lt[last node of graph g]; Sel rows are exact one-hot (f32).
  last_lt = jnp.dot(Sel_ref[...], lt, preferred_element_type=f32)         # (GB, H)

  # graph-major node layout: node (g, p) lives at row g*npg + p
  lt3 = lt.reshape(gb, npg, H)                                        # (GB, npg, H)
  sig = jax.nn.sigmoid(lt3 + last_lt[:, None, :])                     # (GB, npg, H)
  att = jnp.sum(sig * wsc, axis=-1, keepdims=True) + bsc              # (GB, npg, 1)
  # TODO(synk): F.dropout on attention scores (training mode) would need
  # pltpu.prng_seed / prng_random_bits; eval mode => identity.

  # ---- segment softmax + weighted segment sum (reductions over npg axis) ----
  mask = Mask_ref[...].reshape(gb, npg, 1)                            # 1 real node, 0 pad
  att_m = jnp.where(mask > 0.0, att, -1e30)
  gmax = jnp.max(att_m, axis=1, keepdims=True)                        # (GB, 1, 1)
  e = jnp.exp(jnp.minimum(att - gmax, 0.0)) * mask                    # (GB, npg, 1)
  gsum = jnp.sum(e, axis=1, keepdims=True)                            # (GB, 1, 1)
  w = e / jnp.maximum(gsum, 1e-30)                                    # guard empty graph
  session = jnp.sum(w * lt3, axis=1)                                  # (GB, H)

  out_ref[...] = jnp.dot(session, Wfc, preferred_element_type=f32) + bfc


def run_sr_gnn_attn(P, Xb, Ab, Selb, Maskb, *, hidden_dim, din_pad, items_pad,
                    num_iterations, graphs_per_block, nodes_per_graph):
  nblk, NB, _ = Xb.shape
  GB, npg, H = graphs_per_block, nodes_per_graph, hidden_dim
  rows = P.shape[0]
  kernel = functools.partial(
      sr_gnn_attn_kernel, hidden_dim=H, din_pad=din_pad, items_pad=items_pad,
      num_iterations=num_iterations, graphs_per_block=GB,
      nodes_per_graph=npg)

  # advisory cost estimate so XLA overlaps the surrounding glue with the kernel
  flops_blk = (2 * NB * din_pad * H
               + num_iterations * (2 * NB * NB * H + 2 * NB * (2 * H) * (4 * H))
               + 2 * NB * H * H + 2 * GB * NB * H + 2 * GB * H * items_pad)
  trans_blk = num_iterations * 3 * NB * H + NB * H + GB * npg
  bytes_blk = ((NB * NB + NB * din_pad) * 2            # bf16 streams: A, x
               + (GB * NB + NB + GB * items_pad) * 4)  # f32: SelLast, mask, out
  cost = pl.CostEstimate(
      flops=int(nblk * flops_blk),
      transcendentals=int(nblk * trans_blk),
      bytes_accessed=int(nblk * bytes_blk + P.size * 4))

  return pl.pallas_call(
      kernel,
      grid=(nblk,),
      in_specs=[
          pl.BlockSpec((rows, 128), lambda i: (0, 0)),              # packed params
          pl.BlockSpec((None, NB, din_pad), lambda i: (i, 0, 0)),   # x block (bf16)
          pl.BlockSpec((None, NB, NB), lambda i: (i, 0, 0)),        # A block (bf16)
          pl.BlockSpec((None, GB, NB), lambda i: (i, 0, 0)),        # last-node selector
          pl.BlockSpec((None, NB, 1), lambda i: (i, 0, 0)),         # node validity mask
      ],
      out_specs=pl.BlockSpec((None, GB, items_pad), lambda i: (i, 0, 0)),
      out_shape=jax.ShapeDtypeStruct((nblk, GB, items_pad), jnp.float32),
      compiler_params=pltpu.CompilerParams(
          dimension_semantics=("parallel",),
          vmem_limit_bytes=32 * 1024 * 1024),     # explicit budget (v7x has 64 MiB total)
      cost_estimate=cost,
  )(P, Xb, Ab, Selb, Maskb)


# ----------------------------------------------------------------------------
# Glue: pack all weights/biases into one lane-dense (rows, 128) f32 buffer.
# ----------------------------------------------------------------------------
def pack_params(p, *, hidden_dim, din, din_pad, num_items, items_pad):
  H = hidden_dim
  assert 4 * H <= 128 and items_pad <= 128, "packing assumes H<=32, items_pad<=128"
  rows = din_pad + 2 * H + H + H + 6
  rows_pad = ((rows + 7) // 8) * 8
  P = np.zeros((rows_pad, 128), np.float32)
  g = lambda k: np.asarray(p[k], np.float32)
  r1 = din_pad; r2 = r1 + 2 * H; r3 = r2 + H; rb = r3 + H
  P[0:din, 0:H] = g('Wmsg')
  # fused GRU gate weight: [[Wir | Wiz | Win |  0 ], [Whr | Whz |  0  | Whn]]
  P[r1:r1 + H, 0:H] = g('Wir')
  P[r1:r1 + H, H:2 * H] = g('Wiz')
  P[r1:r1 + H, 2 * H:3 * H] = g('Win')
  P[r1 + H:r2, 0:H] = g('Whr')
  P[r1 + H:r2, H:2 * H] = g('Whz')
  P[r1 + H:r2, 3 * H:4 * H] = g('Whn')
  P[r2:r3, 0:H] = g('Watt')
  P[r3:rb, 0:num_items] = g('Wfc')
  P[rb + 0, 0:H] = g('bmsg')[0]
  P[rb + 1, 0:H] = g('bir')[0] + g('bhr')[0]
  P[rb + 1, H:2 * H] = g('biz')[0] + g('bhz')[0]
  P[rb + 1, 2 * H:3 * H] = g('bin')[0]
  P[rb + 1, 3 * H:4 * H] = g('bhn')[0]
  P[rb + 2, 0:H] = g('batt')[0]
  P[rb + 3, 0:H] = g('Wsc')[:, 0]
  P[rb + 4, 0] = float(g('bsc')[0, 0])
  P[rb + 5, 0:num_items] = g('bfc')[0]
  return jnp.asarray(P)


# ----------------------------------------------------------------------------
# Glue: blocked, padded graph-structure tensors (graph-major node layout).
# ----------------------------------------------------------------------------
def build_blocked_graph(x_np, src, dst, batch, num_graphs, *, graphs_per_block,
                        nodes_per_graph_pad, din_pad):
  N, din = x_np.shape
  gb, npg = graphs_per_block, nodes_per_graph_pad
  nblk = (num_graphs + gb - 1) // gb
  NB = gb * npg
  Xb = np.zeros((nblk, NB, din_pad), np.float32)
  Ab = np.zeros((nblk, NB, NB), np.float32)
  Selb = np.zeros((nblk, gb, NB), np.float32)      # one-hot row per graph: last node
  Maskb = np.zeros((nblk, NB, 1), np.float32)      # 1 real node, 0 padding

  batch = np.asarray(batch)
  counts = np.zeros(num_graphs, np.int64)
  blk_of = np.zeros(N, np.int64)
  loc_of = np.zeros(N, np.int64)
  last_global = -np.ones(num_graphs, np.int64)
  for i in range(N):
    g = int(batch[i])
    blk, lg = g // gb, g % gb
    pos = int(counts[g]); counts[g] += 1
    assert pos < npg, "nodes_per_graph_pad too small"
    blk_of[i] = blk
    loc_of[i] = lg * npg + pos                     # graph-major node layout
    Xb[blk, loc_of[i], :din] = x_np[i]
    Maskb[blk, loc_of[i], 0] = 1.0
    last_global[g] = max(last_global[g], i)
  for s, d in zip(np.asarray(src), np.asarray(dst)):
    s, d = int(s), int(d)
    assert blk_of[s] == blk_of[d], "edge crosses graph blocks"
    Ab[blk_of[d], loc_of[d], loc_of[s]] += 1.0     # message s -> d
  deg = Ab.sum(axis=2, keepdims=True)
  Ab = Ab / np.maximum(deg, 1.0)                   # aggr='mean'
  for g in range(num_graphs):
    if last_global[g] >= 0:
      blk, lg = g // gb, g % gb
      Selb[blk, lg, loc_of[last_global[g]]] = 1.0
  # the two big HBM streams go bf16; selector/mask stay exact f32 (tiny)
  return (jnp.asarray(Xb, dtype=jnp.bfloat16),
          jnp.asarray(Ab, dtype=jnp.bfloat16),
          jnp.asarray(Selb), jnp.asarray(Maskb), nblk)


# ----------------------------------------------------------------------------
# Pure-JAX f32 reference (mirrors the PyTorch forward) for correctness check.
# ----------------------------------------------------------------------------
def reference_forward(p, x, A, S, B_onehot, Assign, MaskNeg, num_iterations):
  h = x @ p['Wmsg'] + p['bmsg']
  for _ in range(num_iterations):
    m = A @ h
    r = jax.nn.sigmoid(m @ p['Wir'] + p['bir'] + h @ p['Whr'] + p['bhr'])
    z = jax.nn.sigmoid(m @ p['Wiz'] + p['biz'] + h @ p['Whz'] + p['bhz'])
    n = jnp.tanh(m @ p['Win'] + p['bin'] + r * (h @ p['Whn'] + p['bhn']))
    h = (1.0 - z) * n + z * h
  lt = h @ p['Watt'] + p['batt']
  last = S @ h
  last_lt = last @ p['Watt'] + p['batt']
  expanded = Assign @ last_lt
  att = jax.nn.sigmoid(lt + expanded) @ p['Wsc'] + p['bsc']
  gmax = jnp.max(att.T + MaskNeg, axis=1, keepdims=True)
  node_max = Assign @ gmax
  e = jnp.exp(att - node_max)
  gsum = B_onehot @ e
  node_sum = Assign @ gsum
  w = e / node_sum
  session = B_onehot @ (w * lt)
  return session @ p['Wfc'] + p['bfc']


if __name__ == "__main__":
  # ---------------- configuration (small, consistent with the module) --------
  hidden_dim = 32
  embedding_dim = 8
  num_items = 50
  num_categories = 10
  num_sub_categories = 10
  num_elements = 10
  num_brands = 10
  num_iterations = 1
  # dropout_rate = 0.0 (eval mode -> identity)

  B = 16                                       # sessions / graphs
  lengths = [3 + (g % 4) for g in range(B)]    # 3..6 items per session
  N = int(sum(lengths))                        # 72 nodes
  Din = 5 * embedding_dim + 1                  # 41
  DIN_PAD = ((Din + 7) // 8) * 8               # 48
  ITEMS_PAD = 128                              # lane-dense output (pad 50 -> 128)
  GRAPHS_PER_BLOCK = 8                         # GB multiple of 8
  NODES_PER_GRAPH_PAD = 16                     # NB = 8*16 = 128 nodes per block
  # nblk = 2 -> even, so v7x's 2 TensorCores split the "parallel" grid evenly

  key = jax.random.PRNGKey(0)
  ks = list(jax.random.split(key, 32))
  kit = iter(ks)

  def uniform(shape, k):
    return jax.random.uniform(next(kit), shape, jnp.float32, -k, k)

  kH = 1.0 / np.sqrt(hidden_dim)
  kD = 1.0 / np.sqrt(Din)
  params = dict(
      Wmsg=uniform((Din, hidden_dim), kD), bmsg=uniform((1, hidden_dim), kD),
      Wir=uniform((hidden_dim, hidden_dim), kH), Wiz=uniform((hidden_dim, hidden_dim), kH),
      Win=uniform((hidden_dim, hidden_dim), kH),
      bir=uniform((1, hidden_dim), kH), biz=uniform((1, hidden_dim), kH),
      bin=uniform((1, hidden_dim), kH),
      Whr=uniform((hidden_dim, hidden_dim), kH), Whz=uniform((hidden_dim, hidden_dim), kH),
      Whn=uniform((hidden_dim, hidden_dim), kH),
      bhr=uniform((1, hidden_dim), kH), bhz=uniform((1, hidden_dim), kH),
      bhn=uniform((1, hidden_dim), kH),
      Watt=uniform((hidden_dim, hidden_dim), kH), batt=uniform((1, hidden_dim), kH),
      Wsc=uniform((hidden_dim, 1), kH), bsc=uniform((1, 1), kH),
      Wfc=uniform((hidden_dim, num_items), kH), bfc=uniform((1, num_items), kH),
  )

  # embedding tables (NodeEmbedding)
  emb_cat = jax.random.normal(next(kit), (num_categories, embedding_dim), jnp.float32)
  emb_sub = jax.random.normal(next(kit), (num_sub_categories, embedding_dim), jnp.float32)
  emb_elm = jax.random.normal(next(kit), (num_elements, embedding_dim), jnp.float32)
  emb_brd = jax.random.normal(next(kit), (num_brands, embedding_dim), jnp.float32)
  emb_itm = jax.random.normal(next(kit), (num_items, embedding_dim), jnp.float32)

  # ---------------- synthetic session-graph data ------------------------------
  category = jax.random.randint(next(kit), (N,), 0, num_categories)
  sub_category = jax.random.randint(next(kit), (N,), 0, num_sub_categories)
  element = jax.random.randint(next(kit), (N,), 0, num_elements)
  brand = jax.random.randint(next(kit), (N,), 0, num_brands)
  product_id = jax.random.randint(next(kit), (N,), 0, num_items)
  price = jax.random.uniform(next(kit), (N, 1), jnp.float32)

  batch_np = np.repeat(np.arange(B), lengths).astype(np.int32)
  src_list, dst_list = [], []
  off = 0
  for g in range(B):                       # chain edges within each session, both directions
    for i in range(lengths[g] - 1):
      src_list += [off + i, off + i + 1]
      dst_list += [off + i + 1, off + i]
    off += lengths[g]
  src = jnp.array(src_list, dtype=jnp.int32)
  dst = jnp.array(dst_list, dtype=jnp.int32)
  batch = jnp.asarray(batch_np)

  # ---------------- glue: embedding lookup (pure gather, host side) -----------
  # TODO(synk): embedding gathers + graph blocking stay in XLA/numpy glue; only
  # the dense per-block forward runs inside the Pallas kernel.
  embedding = jnp.concatenate(
      [emb_cat[category], emb_sub[sub_category], emb_elm[element],
       emb_brd[brand], emb_itm[product_id]], axis=1)             # (N, 5E)
  x = jnp.concatenate([price, embedding], axis=1)                # (N, Din)

  # ---------------- glue: packed params + blocked graph structure -------------
  P = pack_params(params, hidden_dim=hidden_dim, din=Din, din_pad=DIN_PAD,
                  num_items=num_items, items_pad=ITEMS_PAD)
  Xb, Ab, Selb, Maskb, nblk = build_blocked_graph(
      np.asarray(x), np.asarray(src), np.asarray(dst), batch_np, B,
      graphs_per_block=GRAPHS_PER_BLOCK,
      nodes_per_graph_pad=NODES_PER_GRAPH_PAD, din_pad=DIN_PAD)

  # ---------------- run kernel -------------------------------------------------
  out_blocks = run_sr_gnn_attn(P, Xb, Ab, Selb, Maskb,
                               hidden_dim=hidden_dim, din_pad=DIN_PAD,
                               items_pad=ITEMS_PAD,
                               num_iterations=num_iterations,
                               graphs_per_block=GRAPHS_PER_BLOCK,
                               nodes_per_graph=NODES_PER_GRAPH_PAD)
  out_blocks = jax.block_until_ready(out_blocks)
  scores = np.asarray(out_blocks).reshape(
      nblk * GRAPHS_PER_BLOCK, ITEMS_PAD)[:B, :num_items]

  # ---------------- f32 reference (global dense, unfused) ---------------------
  A_cnt = jnp.zeros((N, N), jnp.float32).at[dst, src].add(1.0)
  indeg = jnp.sum(A_cnt, axis=1, keepdims=True)
  A_glob = A_cnt / jnp.maximum(indeg, 1.0)
  B_onehot = (batch[None, :] == jnp.arange(B)[:, None]).astype(jnp.float32)
  Assign = B_onehot.T
  MaskNeg = (1.0 - B_onehot) * (-1e30)
  last_idx = jax.ops.segment_max(jnp.arange(N), batch, num_segments=B)
  S = jax.nn.one_hot(last_idx, N, dtype=jnp.float32)
  ref = reference_forward(params, x, A_glob, S, B_onehot, Assign, MaskNeg,
                          num_iterations)
  # tolerance is relaxed because the kernel uses bf16 for x/A and the weight
  # matmul inputs (f32 accumulation / f32 elementwise everywhere).
  np.testing.assert_allclose(scores, np.asarray(ref), rtol=5e-2, atol=5e-2)

  print("KERNEL_OK")
</pallas_src>

<mosaic_0001>
module attributes {stable_mosaic.version = 11 : i64} {
  func.func @sr_gnn_attn_kernel(%arg0: i32, %arg1: memref<184x128xf32, #tpu.memory_space<vmem>>, %arg2: memref<1x128x48xbf16, #tpu.memory_space<vmem>>, %arg3: memref<1x128x128xbf16, #tpu.memory_space<vmem>>, %arg4: memref<1x8x128xf32, #tpu.memory_space<vmem>>, %arg5: memref<1x128x1xf32, #tpu.memory_space<vmem>>, %arg6: memref<1x8x128xf32, #tpu.memory_space<vmem>>) attributes {dimension_semantics = [#tpu.dimension_semantics<parallel>], iteration_bounds = array<i64: 2>, scalar_prefetch = 0 : i64, scratch_operands = 0 : i64, tpu.core_type = #tpu.core_type<tc>, window_params = [{pipeline_mode = #tpu.pipeline_mode<synchronous>, transform_indices = @transform_0, window_bounds = array<i64: 184, 128>}, {transform_indices = @transform_1, window_bounds = array<i64: 1, 128, 48>}, {transform_indices = @transform_2, window_bounds = array<i64: 1, 128, 128>}, {transform_indices = @transform_3, window_bounds = array<i64: 1, 8, 128>}, {transform_indices = @transform_4, window_bounds = array<i64: 1, 128, 1>}, {transform_indices = @transform_5, window_bounds = array<i64: 1, 8, 128>}]} {
    %c0 = arith.constant 0 : index
    %c0_0 = arith.constant 0 : index
    %0 = vector.load %arg1[%c0, %c0_0] : memref<184x128xf32, #tpu.memory_space<vmem>>, vector<48x32xf32>
    %1 = arith.truncf %0 : vector<48x32xf32> to vector<48x32xbf16>
    %c48 = arith.constant 48 : index
    %c0_1 = arith.constant 0 : index
    %2 = vector.load %arg1[%c48, %c0_1] : memref<184x128xf32, #tpu.memory_space<vmem>>, vector<64x128xf32>
    %3 = arith.truncf %2 : vector<64x128xf32> to vector<64x128xbf16>
    %c112 = arith.constant 112 : index
    %c0_2 = arith.constant 0 : index
    %4 = vector.load %arg1[%c112, %c0_2] : memref<184x128xf32, #tpu.memory_space<vmem>>, vector<32x32xf32>
    %5 = arith.truncf %4 : vector<32x32xf32> to vector<32x32xbf16>
    %c144 = arith.constant 144 : index
    %c0_3 = arith.constant 0 : index
    %6 = vector.load %arg1[%c144, %c0_3] : memref<184x128xf32, #tpu.memory_space<vmem>>, vector<32x128xf32>
    %c176 = arith.constant 176 : index
    %c0_4 = arith.constant 0 : index
    %7 = vector.load %arg1[%c176, %c0_4] : memref<184x128xf32, #tpu.memory_space<vmem>>, vector<1x32xf32>
    %c177 = arith.constant 177 : index
    %c0_5 = arith.constant 0 : index
    %8 = vector.load %arg1[%c177, %c0_5] : memref<184x128xf32, #tpu.memory_space<vmem>>, vector<1x128xf32>
    %c178 = arith.constant 178 : index
    %c0_6 = arith.constant 0 : index
    %9 = vector.load %arg1[%c178, %c0_6] : memref<184x128xf32, #tpu.memory_space<vmem>>, vector<1x32xf32>
    %c179 = arith.constant 179 : index
    %c0_7 = arith.constant 0 : index
    %10 = vector.load %arg1[%c179, %c0_7] : memref<184x128xf32, #tpu.memory_space<vmem>>, vector<1x32xf32>
    %c180 = arith.constant 180 : index
    %c0_8 = arith.constant 0 : index
    %11 = vector.load %arg1[%c180, %c0_8] : memref<184x128xf32, #tpu.memory_space<vmem>>, vector<1x1xf32>
    %c181 = arith.constant 181 : index
    %c0_9 = arith.constant 0 : index
    %12 = vector.load %arg1[%c181, %c0_9] : memref<184x128xf32, #tpu.memory_space<vmem>>, vector<1x128xf32>
    %c0_10 = arith.constant 0 : index
    %c0_11 = arith.constant 0 : index
    %c0_12 = arith.constant 0 : index
    %13 = vector.load %arg2[%c0_10, %c0_11, %c0_12] : memref<1x128x48xbf16, #tpu.memory_space<vmem>>, vector<1x128x48xbf16>
    %14 = vector.shape_cast %13 : vector<1x128x48xbf16> to vector<128x48xbf16>
    %c0_13 = arith.constant 0 : index
    %c0_14 = arith.constant 0 : index
    %c0_15 = arith.constant 0 : index
    %15 = vector.load %arg3[%c0_13, %c0_14, %c0_15] : memref<1x128x128xbf16, #tpu.memory_space<vmem>>, vector<1x128x128xbf16>
    %16 = vector.shape_cast %15 : vector<1x128x128xbf16> to vector<128x128xbf16>
    %cst = arith.constant dense<0.000000e+00> : vector<128x32xf32>
    %17 = tpu.matmul %14, %1, %cst {dimension_numbers = #tpu.dot_dimension_numbers<[1], [0], [0], [1], [0, 0, 1, 1], [], []>} : vector<128x48xbf16>, vector<48x32xbf16>, vector<128x32xf32> -> vector<128x32xf32>
    %18 = vector.broadcast %7 : vector<1x32xf32> to vector<128x32xf32>
    %19 = arith.addf %17, %18 : vector<128x32xf32>
    %c0_i32 = arith.constant 0 : i32
    %20 = arith.truncf %19 : vector<128x32xf32> to vector<128x32xbf16>
    %cst_16 = arith.constant dense<0.000000e+00> : vector<128x32xf32>
    %21 = tpu.matmul %16, %20, %cst_16 {dimension_numbers = #tpu.dot_dimension_numbers<[1], [0], [0], [1], [0, 0, 1, 1], [], []>} : vector<128x128xbf16>, vector<128x32xbf16>, vector<128x32xf32> -> vector<128x32xf32>
    %22 = tpu.concatenate %21, %19 in 1 : vector<128x32xf32>, vector<128x32xf32> -> vector<128x64xf32>
    %23 = arith.truncf %22 : vector<128x64xf32> to vector<128x64xbf16>
    %cst_17 = arith.constant dense<0.000000e+00> : vector<128x128xf32>
    %24 = tpu.matmul %23, %3, %cst_17 {dimension_numbers = #tpu.dot_dimension_numbers<[1], [0], [0], [1], [0, 0, 1, 1], [], []>} : vector<128x64xbf16>, vector<64x128xbf16>, vector<128x128xf32> -> vector<128x128xf32>
    %25 = vector.broadcast %8 : vector<1x128xf32> to vector<128x128xf32>
    %26 = arith.addf %24, %25 : vector<128x128xf32>
    %27 = vector.extract_strided_slice %26 {offsets = [0, 0], sizes = [128, 32], strides = [1, 1]} : vector<128x128xf32> to vector<128x32xf32>
    %28 = arith.negf %27 : vector<128x32xf32>
    %29 = math.exp %28 : vector<128x32xf32>
    %cst_18 = arith.constant 1.000000e+00 : f32
    %30 = vector.broadcast %cst_18 : f32 to vector<128x32xf32>
    %31 = arith.addf %30, %29 : vector<128x32xf32>
    %32 = arith.divf %30, %31 : vector<128x32xf32>
    %33 = vector.extract_strided_slice %26 {offsets = [0, 32], sizes = [128, 32], strides = [1, 1]} : vector<128x128xf32> to vector<128x32xf32>
    %34 = arith.negf %33 : vector<128x32xf32>
    %35 = math.exp %34 : vector<128x32xf32>
    %cst_19 = arith.constant 1.000000e+00 : f32
    %36 = vector.broadcast %cst_19 : f32 to vector<128x32xf32>
    %37 = arith.addf %36, %35 : vector<128x32xf32>
    %38 = arith.divf %36, %37 : vector<128x32xf32>
    %39 = vector.extract_strided_slice %26 {offsets = [0, 64], sizes = [128, 32], strides = [1, 1]} : vector<128x128xf32> to vector<128x32xf32>
    %40 = vector.extract_strided_slice %26 {offsets = [0, 96], sizes = [128, 32], strides = [1, 1]} : vector<128x128xf32> to vector<128x32xf32>
    %41 = arith.mulf %32, %40 : vector<128x32xf32>
    %42 = arith.addf %39, %41 : vector<128x32xf32>
    %43 = math.tanh %42 : vector<128x32xf32>
    %cst_20 = arith.constant 1.000000e+00 : f32
    %44 = vector.broadcast %cst_20 : f32 to vector<128x32xf32>
    %45 = arith.subf %44, %38 : vector<128x32xf32>
    %46 = arith.mulf %45, %43 : vector<128x32xf32>
    %47 = arith.mulf %38, %19 : vector<128x32xf32>
    %48 = arith.addf %46, %47 : vector<128x32xf32>
    %49 = arith.truncf %48 : vector<128x32xf32> to vector<128x32xbf16>
    %cst_21 = arith.constant dense<0.000000e+00> : vector<128x32xf32>
    %50 = tpu.matmul %49, %5, %cst_21 {dimension_numbers = #tpu.dot_dimension_numbers<[1], [0], [0], [1], [0, 0, 1, 1], [], []>} : vector<128x32xbf16>, vector<32x32xbf16>, vector<128x32xf32> -> vector<128x32xf32>
    %51 = vector.broadcast %9 : vector<1x32xf32> to vector<128x32xf32>
    %52 = arith.addf %50, %51 : vector<128x32xf32>
    %c0_22 = arith.constant 0 : index
    %c0_23 = arith.constant 0 : index
    %c0_24 = arith.constant 0 : index
    %53 = vector.load %arg4[%c0_22, %c0_23, %c0_24] : memref<1x8x128xf32, #tpu.memory_space<vmem>>, vector<1x8x128xf32>
    %54 = vector.shape_cast %53 : vector<1x8x128xf32> to vector<8x128xf32>
    %cst_25 = arith.constant dense<0.000000e+00> : vector<8x32xf32>
    %55 = tpu.matmul %54, %52, %cst_25 {dimension_numbers = #tpu.dot_dimension_numbers<[1], [0], [0], [1], [0, 0, 1, 1], [], []>} : vector<8x128xf32>, vector<128x32xf32>, vector<8x32xf32> -> vector<8x32xf32>
    %56 = vector.shape_cast %52 : vector<128x32xf32> to vector<8x16x32xf32>
    %57 = vector.shape_cast %55 : vector<8x32xf32> to vector<8x1x32xf32>
    %58 = vector.broadcast %57 : vector<8x1x32xf32> to vector<8x16x32xf32>
    %59 = arith.addf %56, %58 : vector<8x16x32xf32>
    %60 = arith.negf %59 : vector<8x16x32xf32>
    %61 = math.exp %60 : vector<8x16x32xf32>
    %cst_26 = arith.constant 1.000000e+00 : f32
    %62 = vector.broadcast %cst_26 : f32 to vector<8x16x32xf32>
    %63 = arith.addf %62, %61 : vector<8x16x32xf32>
    %64 = arith.divf %62, %63 : vector<8x16x32xf32>
    %65 = vector.shape_cast %10 : vector<1x32xf32> to vector<1x1x32xf32>
    %66 = vector.broadcast %65 : vector<1x1x32xf32> to vector<8x16x32xf32>
    %67 = arith.mulf %64, %66 : vector<8x16x32xf32>
    %cst_27 = arith.constant dense<0.000000e+00> : vector<8x16xf32>
    %68 = vector.multi_reduction <add>, %67, %cst_27 [2] : vector<8x16x32xf32> to vector<8x16xf32>
    %69 = vector.shape_cast %68 : vector<8x16xf32> to vector<8x16x1xf32>
    %70 = vector.shape_cast %11 : vector<1x1xf32> to vector<1x1x1xf32>
    %71 = vector.broadcast %70 : vector<1x1x1xf32> to vector<8x16x1xf32>
    %72 = arith.addf %69, %71 : vector<8x16x1xf32>
    %c0_28 = arith.constant 0 : index
    %c0_29 = arith.constant 0 : index
    %c0_30 = arith.constant 0 : index
    %73 = vector.load %arg5[%c0_28, %c0_29, %c0_30] : memref<1x128x1xf32, #tpu.memory_space<vmem>>, vector<1x128x1xf32>
    %74 = vector.shape_cast %73 : vector<1x128x1xf32> to vector<128x1xf32>
    %75 = vector.shape_cast %74 : vector<128x1xf32> to vector<8x16x1xf32>
    %cst_31 = arith.constant 0.000000e+00 : f32
    %76 = vector.broadcast %cst_31 : f32 to vector<8x16x1xf32>
    %77 = arith.cmpf ogt, %75, %76 : vector<8x16x1xf32>
    %cst_32 = arith.constant -1.000000e+30 : f32
    %78 = vector.broadcast %cst_32 : f32 to vector<8x16x1xf32>
    %79 = arith.select %77, %72, %78 : vector<8x16x1xi1>, vector<8x16x1xf32>
    %cst_33 = arith.constant dense<0xFF800000> : vector<8x1xf32>
    %80 = vector.multi_reduction <maximumf>, %79, %cst_33 [1] : vector<8x16x1xf32> to vector<8x1xf32>
    %81 = vector.shape_cast %80 : vector<8x1xf32> to vector<8x1x1xf32>
    %82 = vector.broadcast %81 : vector<8x1x1xf32> to vector<8x16x1xf32>
    %83 = arith.subf %72, %82 : vector<8x16x1xf32>
    %cst_34 = arith.constant 0.000000e+00 : f32
    %84 = vector.broadcast %cst_34 : f32 to vector<8x16x1xf32>
    %85 = arith.minimumf %83, %84 : vector<8x16x1xf32>
    %86 = math.exp %85 : vector<8x16x1xf32>
    %87 = arith.mulf %86, %75 : vector<8x16x1xf32>
    %cst_35 = arith.constant dense<0.000000e+00> : vector<8x1xf32>
    %88 = vector.multi_reduction <add>, %87, %cst_35 [1] : vector<8x16x1xf32> to vector<8x1xf32>
    %89 = vector.shape_cast %88 : vector<8x1xf32> to vector<8x1x1xf32>
    %cst_36 = arith.constant 1.000000e-30 : f32
    %90 = vector.broadcast %cst_36 : f32 to vector<8x1x1xf32>
    %91 = arith.maximumf %89, %90 : vector<8x1x1xf32>
    %92 = vector.broadcast %91 : vector<8x1x1xf32> to vector<8x16x1xf32>
    %93 = arith.divf %87, %92 : vector<8x16x1xf32>
    %94 = vector.broadcast %93 : vector<8x16x1xf32> to vector<8x16x32xf32>
    %95 = arith.mulf %94, %56 : vector<8x16x32xf32>
    %cst_37 = arith.constant dense<0.000000e+00> : vector<8x32xf32>
    %96 = vector.multi_reduction <add>, %95, %cst_37 [1] : vector<8x16x32xf32> to vector<8x32xf32>
    %cst_38 = arith.constant dense<0.000000e+00> : vector<8x128xf32>
    %97 = tpu.matmul %96, %6, %cst_38 {dimension_numbers = #tpu.dot_dimension_numbers<[1], [0], [0], [1], [0, 0, 1, 1], [], []>} : vector<8x32xf32>, vector<32x128xf32>, vector<8x128xf32> -> vector<8x128xf32>
    %98 = vector.broadcast %12 : vector<1x128xf32> to vector<8x128xf32>
    %99 = arith.addf %97, %98 : vector<8x128xf32>
    %c0_39 = arith.constant 0 : index
    %c0_40 = arith.constant 0 : index
    %c0_41 = arith.constant 0 : index
    %100 = vector.load %arg6[%c0_39, %c0_40, %c0_41] : memref<1x8x128xf32, #tpu.memory_space<vmem>>, vector<1x8x128xf32>
    %101 = vector.shape_cast %100 : vector<1x8x128xf32> to vector<8x128xf32>
    %102 = vector.shape_cast %99 : vector<8x128xf32> to vector<1x8x128xf32>
    tpu.vector_store %arg6[%c0_39, %c0_40, %c0_41], %102 {strides = array<i32>} : memref<1x8x128xf32, #tpu.memory_space<vmem>>, vector<1x8x128xf32>,
    return
  }
  func.func @transform_0(%arg0: i32) -> (i32, i32) {
    %c0_i32 = arith.constant 0 : i32
    %c0_i32_0 = arith.constant 0 : i32
    %c0_i32_1 = arith.constant 0 : i32
    return %c0_i32, %c0_i32_0 : i32, i32
  }
  func.func @transform_1(%arg0: i32) -> (i32, i32, i32) {
    %c0_i32 = arith.constant 0 : i32
    %c0_i32_0 = arith.constant 0 : i32
    %c0_i32_1 = arith.constant 0 : i32
    return %arg0, %c0_i32, %c0_i32_0 : i32, i32, i32
  }
  func.func @transform_2(%arg0: i32) -> (i32, i32, i32) {
    %c0_i32 = arith.constant 0 : i32
    %c0_i32_0 = arith.constant 0 : i32
    %c0_i32_1 = arith.constant 0 : i32
    return %arg0, %c0_i32, %c0_i32_0 : i32, i32, i32
  }
  func.func @transform_3(%arg0: i32) -> (i32, i32, i32) {
    %c0_i32 = arith.constant 0 : i32
    %c0_i32_0 = arith.constant 0 : i32
    %c0_i32_1 = arith.constant 0 : i32
    return %arg0, %c0_i32, %c0_i32_0 : i32, i32, i32
  }
  func.func @transform_4(%arg0: i32) -> (i32, i32, i32) {
    %c0_i32 = arith.constant 0 : i32
    %c0_i32_0 = arith.constant 0 : i32
    %c0_i32_1 = arith.constant 0 : i32
    return %arg0, %c0_i32, %c0_i32_0 : i32, i32, i32
  }
  func.func @transform_5(%arg0: i32) -> (i32, i32, i32) {
    %c0_i32 = arith.constant 0 : i32
    %c0_i32_0 = arith.constant 0 : i32
    %c0_i32_1 = arith.constant 0 : i32
    return %arg0, %c0_i32, %c0_i32_0 : i32, i32, i32
  }
}

</mosaic_0001>

<llo_original>
// kernel: tpu_custom_call.1
$region0: #{tpu_custom_call.1}
  #allocation0 [shape = 'u32[]', space=smem, size = 0x4, offset = 0x4, fixed_abs, tag = 'smem constant byte address 0x4 - core index']
  #allocation1 [shape = 'u32[144,128]{1,0:T(1,128)}', space=vmem, size = 0x12000, scoped, tag = 'internal scratch']
  %s0 = inlined_call_operand.vmem [shape: f32[184,128], index: 0, kind: input, shape index: {}]
  %s1 = inlined_call_operand.vmem [shape: bf16[2,128,48], index: 1, kind: input, shape index: {}]
  %s2 = inlined_call_operand.vmem [shape: bf16[2,128,128], index: 2, kind: input, shape index: {}]
  %s3 = inlined_call_operand.vmem [shape: f32[2,8,128], index: 3, kind: input, shape index: {}]
  %s4 = inlined_call_operand.vmem [shape: f32[2,128,1], index: 4, kind: input, shape index: {}]
  %s5 = inlined_call_operand.hbm [shape: f32[2,8,128], index: 5, kind: output, shape index: {}]
  %s6 = sld [smem:[#allocation0]]
  $region53: #{tpu_custom_call.1} parent=0
    _
  %s8 = ssub.s32 1, %s6
  %s9 = scalar_select 0, %s8, %s6
  $region1: #{tpu_custom_call.1} parent=0
    #allocation2 [shape = 'u8[8192]{0}', space=vmem, size = 0x2000, scoped, tag = 'output window, operand 0']
    #allocation3 [shape = 's32[2]{0}', space=sflag, size = 0x8, scoped, tag = 'scoped memory for tpu_custom_call.1']
    %10 = vsyncpa [#allocation3], 0
    %s11 = scalar_lea.sflag [#allocation3], 1
    %12 = vsyncpa %s11, 0
    loop: start=0, step=1, limit=4
    $region2: #{tpu_custom_call.1} parent=1 // loop_pre_header
      _
    $region3: #{tpu_custom_call.1} parent=1 // loop_header
      %s14 = sphi 0, %s18
      %p15 = scmp.ge.s32.totalorder %s14, 4
      %s22 = sphi 0, %s22
      %s24 = sphi 0, %s22
      %s25 = sphi 0, %s24
      %s39 = sphi 0, %s25
      %s45 = sphi 0, %s47
      %s48 = sphi 0, %s45
      %s49 = sphi 0, %s48
      %s65 = sphi 0, %s49
      %s71 = sphi 0, %s73
      %s74 = sphi 0, %s71
      %s75 = sphi 0, %s74
      %s91 = sphi 0, %s75
      %s97 = sphi 0, %s99
      %s100 = sphi 0, %s97
      %s101 = sphi 0, %s100
      %s117 = sphi 0, %s101
      %s123 = sphi 0, %s125
      %s126 = sphi 0, %s123
      %s127 = sphi 0, %s126
      %s143 = sphi 0, %s127
      %s149 = sphi 0, %s151
      %s152 = sphi 0, %s149
      %s153 = sphi 0, %s152
      %s169 = sphi 0, %s153
    $region4: #{tpu_custom_call.1} parent=1 // loop_header_branch
      %17 = sbr.rel (%p15) target = $region8
    $region5: #{tpu_custom_call.1} parent=1 // loop_body
      %s19 = ssub.s32 %s14, 1
      %s20 = ssub.s32 %s14, 2
      %s21 = sadd.s32 %s14, 1
      %s23 = sadd.s32 %s22, 1
      %p26 = scmp.eq.s32.totalorder %s14, 1
      %p27 = scmp.ne.s32.totalorder %s22, %s24
      %p28 = scmp.eq.s32.totalorder %s14, 0
      %p29 = por %p27, %p28
      %p30 = scmp.ne.s32.totalorder %s22, %s24
      %p31 = scmp.eq.s32.totalorder %s19, 1
      %p32 = por %p30, %p31
      %p33 = scmp.ne.s32.totalorder %s24, %s25
      %p34 = scmp.eq.s32.totalorder %s19, 0
      %p35 = por %p33, %p34
      %p36 = scmp.ne.s32.totalorder %s24, %s25
      %p37 = scmp.eq.s32.totalorder %s20, 1
      %p38 = por %p36, %p37
      %p40 = scmp.ne.s32.totalorder %s25, %s39
      %p41 = scmp.eq.s32.totalorder %s20, 0
      %p42 = por %p40, %p41
      %s43 = ssub.s32 %s14, %s21
      %p44 = scmp.eq.s32.totalorder %s43, 0
      %s46 = sadd.s32 %s45, 1
      %s47 = scalar_select %p44, %s45, %s46
      %p50 = pneg %p44
      %p51 = scmp.eq.s32.totalorder %s14, 1
      %p52 = por %p50, %p51
      %p53 = scmp.ne.s32.totalorder %s45, %s48
      %p54 = scmp.eq.s32.totalorder %s14, 0
      %p55 = por %p53, %p54
      %p56 = scmp.ne.s32.totalorder %s45, %s48
      %p57 = scmp.eq.s32.totalorder %s19, 1
      %p58 = por %p56, %p57
      %p59 = scmp.ne.s32.totalorder %s48, %s49
      %p60 = scmp.eq.s32.totalorder %s19, 0
      %p61 = por %p59, %p60
      %p62 = scmp.ne.s32.totalorder %s48, %s49
      %p63 = scmp.eq.s32.totalorder %s20, 1
      %p64 = por %p62, %p63
      %p66 = scmp.ne.s32.totalorder %s49, %s65
      %p67 = scmp.eq.s32.totalorder %s20, 0
      %p68 = por %p66, %p67
      %s69 = ssub.s32 %s14, %s21
      %p70 = scmp.eq.s32.totalorder %s69, 0
      %s72 = sadd.s32 %s71, 1
      %s73 = scalar_select %p70, %s71, %s72
      %p76 = pneg %p70
      %p77 = scmp.eq.s32.totalorder %s14, 1
      %p78 = por %p76, %p77
      %p79 = scmp.ne.s32.totalorder %s71, %s74
      %p80 = scmp.eq.s32.totalorder %s14, 0
      %p81 = por %p79, %p80
      %p82 = scmp.ne.s32.totalorder %s71, %s74
      %p83 = scmp.eq.s32.totalorder %s19, 1
      %p84 = por %p82, %p83
      %p85 = scmp.ne.s32.totalorder %s74, %s75
      %p86 = scmp.eq.s32.totalorder %s19, 0
      %p87 = por %p85, %p86
      %p88 = scmp.ne.s32.totalorder %s74, %s75
      %p89 = scmp.eq.s32.totalorder %s20, 1
      %p90 = por %p88, %p89
      %p92 = scmp.ne.s32.totalorder %s75, %s91
      %p93 = scmp.eq.s32.totalorder %s20, 0
      %p94 = por %p92, %p93
      %s95 = ssub.s32 %s14, %s21
      %p96 = scmp.eq.s32.totalorder %s95, 0
      %s98 = sadd.s32 %s97, 1
      %s99 = scalar_select %p96, %s97, %s98
      %p102 = pneg %p96
      %p103 = scmp.eq.s32.totalorder %s14, 1
      %p104 = por %p102, %p103
      %p105 = scmp.ne.s32.totalorder %s97, %s100
      %p106 = scmp.eq.s32.totalorder %s14, 0
      %p107 = por %p105, %p106
      %p108 = scmp.ne.s32.totalorder %s97, %s100
      %p109 = scmp.eq.s32.totalorder %s19, 1
      %p110 = por %p108, %p109
      %p111 = scmp.ne.s32.totalorder %s100, %s101
      %p112 = scmp.eq.s32.totalorder %s19, 0
      %p113 = por %p111, %p112
      %p114 = scmp.ne.s32.totalorder %s100, %s101
      %p115 = scmp.eq.s32.totalorder %s20, 1
      %p116 = por %p114, %p115
      %p118 = scmp.ne.s32.totalorder %s101, %s117
      %p119 = scmp.eq.s32.totalorder %s20, 0
      %p120 = por %p118, %p119
      %s121 = ssub.s32 %s14, %s21
      %p122 = scmp.eq.s32.totalorder %s121, 0
      %s124 = sadd.s32 %s123, 1
      %s125 = scalar_select %p122, %s123, %s124
      %p128 = pneg %p122
      %p129 = scmp.eq.s32.totalorder %s14, 1
      %p130 = por %p128, %p129
      %p131 = scmp.ne.s32.totalorder %s123, %s126
      %p132 = scmp.eq.s32.totalorder %s14, 0
      %p133 = por %p131, %p132
      %p134 = scmp.ne.s32.totalorder %s123, %s126
      %p135 = scmp.eq.s32.totalorder %s19, 1
      %p136 = por %p134, %p135
      %p137 = scmp.ne.s32.totalorder %s126, %s127
      %p138 = scmp.eq.s32.totalorder %s19, 0
      %p139 = por %p137, %p138
      %p140 = scmp.ne.s32.totalorder %s126, %s127
      %p141 = scmp.eq.s32.totalorder %s20, 1
      %p142 = por %p140, %p141
      %p144 = scmp.ne.s32.totalorder %s127, %s143
      %p145 = scmp.eq.s32.totalorder %s20, 0
      %p146 = por %p144, %p145
      %s147 = ssub.s32 %s14, %s21
      %p148 = scmp.eq.s32.totalorder %s147, 0
      %s150 = sadd.s32 %s149, 1
      %s151 = scalar_select %p148, %s149, %s150
      %p154 = pneg %p148
      %p155 = scmp.eq.s32.totalorder %s14, 1
      %p156 = por %p154, %p155
      %p157 = scmp.ne.s32.totalorder %s149, %s152
      %p158 = scmp.eq.s32.totalorder %s14, 0
      %p159 = por %p157, %p158
      %p160 = scmp.ne.s32.totalorder %s149, %s152
      %p161 = scmp.eq.s32.totalorder %s19, 1
      %p162 = por %p160, %p161
      %p163 = scmp.ne.s32.totalorder %s152, %s153
      %p164 = scmp.eq.s32.totalorder %s19, 0
      %p165 = por %p163, %p164
      %p166 = scmp.ne.s32.totalorder %s152, %s153
      %p167 = scmp.eq.s32.totalorder %s20, 1
      %p168 = por %p166, %p167
      %p170 = scmp.ne.s32.totalorder %s153, %s169
      %p171 = scmp.eq.s32.totalorder %s20, 0
      %p172 = por %p170, %p171
      %p173 = scmp.le.s32.totalorder 1, %s14
      %p174 = scmp.lt.s32.totalorder %s14, 3
      %p175 = pnand %p173, %p174
      %p176 = pneg %p175
      // Predicated region
      $region9: #{tpu_custom_call.1} parent=5 // pred_check
        _
      $region10: #{tpu_custom_call.1} parent=5 // pred_check_branch
        %178 = sbr.rel (%p175) target = $region12
      $region11: #{tpu_custom_call.1} parent=5 // pred_region
        %s179 = ssub.s32 %s14, 1
        // Predicated region
        $region13: #{tpu_custom_call.1} parent=11 // pred_check
          %p180 = pneg %p35
        $region14: #{tpu_custom_call.1} parent=11 // pred_check_branch
          %182 = sbr.rel (%p180) target = $region16
        $region15: #{tpu_custom_call.1} parent=11 // pred_region
          _
        $region16: #{tpu_custom_call.1} parent=11 // pred_fallthru
          _
      $region12: #{tpu_custom_call.1} parent=5 // pred_fallthru
        _
      %p183 = scmp.lt.s32.totalorder %s14, 2
      // Predicated region
      $region17: #{tpu_custom_call.1} parent=5 // pred_check
        %p184 = pneg %p183
      $region18: #{tpu_custom_call.1} parent=5 // pred_check_branch
        %186 = sbr.rel (%p184) target = $region20
      $region19: #{tpu_custom_call.1} parent=5 // pred_region
        // Predicated region
        $region21: #{tpu_custom_call.1} parent=19 // pred_check
          %p187 = pneg %p55
        $region22: #{tpu_custom_call.1} parent=19 // pred_check_branch
          %189 = sbr.rel (%p187) target = $region24
        $region23: #{tpu_custom_call.1} parent=19 // pred_region
          %p190 = scmp.lt.s32.totalorder %s14, 1
          %s191 = scalar_select %p190, %s14, 1
          %s192 = smul.addr %s191, 16
          %s193 = smul.addr %s192, 4
          %s194 = scalar_lea.vmem %s1, %s193
        $region24: #{tpu_custom_call.1} parent=19 // pred_fallthru
          _
        // Predicated region
        $region25: #{tpu_custom_call.1} parent=19 // pred_check
          %p195 = pneg %p81
        $region26: #{tpu_custom_call.1} parent=19 // pred_check_branch
          %197 = sbr.rel (%p195) target = $region28
        $region27: #{tpu_custom_call.1} parent=19 // pred_region
          %p198 = scmp.lt.s32.totalorder %s14, 1
          %s199 = scalar_select %p198, %s14, 1
          %s200 = smul.addr %s199, 16
          %s201 = smul.addr %s200, 4
          %s202 = scalar_lea.vmem %s2, %s201
        $region28: #{tpu_custom_call.1} parent=19 // pred_fallthru
          _
        // Predicated region
        $region29: #{tpu_custom_call.1} parent=19 // pred_check
          %p203 = pneg %p107
        $region30: #{tpu_custom_call.1} parent=19 // pred_check_branch
          %205 = sbr.rel (%p203) target = $region32
        $region31: #{tpu_custom_call.1} parent=19 // pred_region
          %p206 = scmp.lt.s32.totalorder %s14, 1
          %s207 = scalar_select %p206, %s14, 1
          %s208 = smul.addr %s207, 8
          %s209 = scalar_lea.vmem %s3, %s208
        $region32: #{tpu_custom_call.1} parent=19 // pred_fallthru
          _
        // Predicated region
        $region33: #{tpu_custom_call.1} parent=19 // pred_check
          %p210 = pneg %p133
        $region34: #{tpu_custom_call.1} parent=19 // pred_check_branch
          %212 = sbr.rel (%p210) target = $region36
        $region35: #{tpu_custom_call.1} parent=19 // pred_region
          %p213 = scmp.lt.s32.totalorder %s14, 1
          %s214 = scalar_select %p213, %s14, 1
          %s215 = smul.addr %s214, 16
          %s216 = smul.addr %s215, 8
          %s217 = scalar_lea.vmem %s4, %s216
        $region36: #{tpu_custom_call.1} parent=19 // pred_fallthru
          _
      $region20: #{tpu_custom_call.1} parent=5 // pred_fallthru
        _
      %p218 = scmp.le.s32.totalorder 1, %s14
      %p219 = scmp.lt.s32.totalorder %s14, 3
      %p220 = pnand %p218, %p219
      %p221 = pneg %p220
      // Predicated region
      $region37: #{tpu_custom_call.1} parent=5 // pred_check
        _
      $region38: #{tpu_custom_call.1} parent=5 // pred_check_branch
        %223 = sbr.rel (%p220) target = $region40
      $region39: #{tpu_custom_call.1} parent=5 // pred_region
        %s224 = ssub.s32 %s14, 1
        %p225 = pneg %p35
        %p226 = pneg %p32
        %p227 = scmp.lt.s32.totalorder %s19, 1
        %s228 = scalar_select %p227, %s19, 1
        %s229 = smul.addr %s228, 16
        %s230 = smul.addr %s229, 4
        %s231 = scalar_lea.vmem %s1, %s230
        %p232 = pneg %p61
        %p233 = pneg %p58
        %p234 = scmp.lt.s32.totalorder %s19, 1
        %s235 = scalar_select %p234, %s19, 1
        %s236 = smul.addr %s235, 16
        %s237 = smul.addr %s236, 4
        %s238 = scalar_lea.vmem %s2, %s237
        %p239 = pneg %p87
        %p240 = pneg %p84
        %p241 = scmp.lt.s32.totalorder %s19, 1
        %s242 = scalar_select %p241, %s19, 1
        %s243 = smul.addr %s242, 8
        %s244 = scalar_lea.vmem %s3, %s243
        %p245 = pneg %p113
        %p246 = pneg %p110
        %p247 = scmp.lt.s32.totalorder %s19, 1
        %s248 = scalar_select %p247, %s19, 1
        %s249 = smul.addr %s248, 16
        %s250 = smul.addr %s249, 8
        %s251 = scalar_lea.vmem %s4, %s250
        %p252 = pneg %p139
        %p253 = pneg %p136
        %p254 = pneg %p165
        %p255 = pneg %p162
        %s256 = sand.u32 %s152, 1
        %s257 = scalar_lea.sflag [#allocation3], %s256
        %s258 = sand.u32 %s152, 1
        %s259 = smul.addr %s258, 8
        %s260 = scalar_lea.vmem [#allocation2], %s259
        %p261 = scmp.lt.s32.totalorder %s19, 1
        %s262 = scalar_select %p261, %s19, 1
        %s263 = smul.addr %s262, 16
        %s264 = smul.addr %s263, 4
        %s265 = scalar_lea.vmem %s1, %s264
        %p266 = scmp.lt.s32.totalorder %s19, 1
        %s267 = scalar_select %p266, %s19, 1
        %s268 = smul.addr %s267, 16
        %s269 = smul.addr %s268, 4
        %s270 = scalar_lea.vmem %s2, %s269
        %p271 = scmp.lt.s32.totalorder %s19, 1
        %s272 = scalar_select %p271, %s19, 1
        %s273 = smul.addr %s272, 8
        %s274 = scalar_lea.vmem %s3, %s273
        %p275 = scmp.lt.s32.totalorder %s19, 1
        %s276 = scalar_select %p275, %s19, 1
        %s277 = smul.addr %s276, 16
        %s278 = smul.addr %s277, 8
        %s279 = scalar_lea.vmem %s4, %s278
        %v281 = vld [vmem:[%s0] sm:$0xff]
        %v282 = vld [vmem:[%s0 + $0x8] sm:$0xff]
        %v283 = vld [vmem:[%s0 + $0x10] sm:$0xff]
        %v284 = vld [vmem:[%s0 + $0x18] sm:$0xff]
        %v285 = vld [vmem:[%s0 + $0x20] sm:$0xff]
        %v286 = vld [vmem:[%s0 + $0x28] sm:$0xff]
        %v287 = vpack.c.bf16 %v282, %v281
        %v288 = vpack.c.bf16 %v284, %v283
        %v289 = vpack.c.bf16 %v286, %v285
        %v290 = vld [vmem:[%s0 + $0x30] sm:$0xff]
        %v291 = vld [vmem:[%s0 + $0x38] sm:$0xff]
        %v292 = vld [vmem:[%s0 + $0x40] sm:$0xff]
        %v293 = vld [vmem:[%s0 + $0x48] sm:$0xff]
        %v294 = vld [vmem:[%s0 + $0x50] sm:$0xff]
        %v295 = vld [vmem:[%s0 + $0x58] sm:$0xff]
        %v296 = vld [vmem:[%s0 + $0x60] sm:$0xff]
        %v297 = vld [vmem:[%s0 + $0x68] sm:$0xff]
        %v298 = vpack.c.bf16 %v291, %v290
        %v299 = vpack.c.bf16 %v293, %v292
        %v300 = vpack.c.bf16 %v295, %v294
        %v301 = vpack.c.bf16 %v297, %v296
        %v302 = vld [vmem:[%s0 + $0x70] sm:$0xff]
        %v303 = vld [vmem:[%s0 + $0x78] sm:$0xff]
        %v304 = vld [vmem:[%s0 + $0x80] sm:$0xff]
        %v305 = vld [vmem:[%s0 + $0x88] sm:$0xff]
        %v306 = vpack.c.bf16 %v303, %v302
        %v307 = vpack.c.bf16 %v305, %v304
        %v308 = vld [vmem:[%s0 + $0x90] sm:$0xff]
        %v309 = vld [vmem:[%s0 + $0x98] sm:$0xff]
        %v310 = vld [vmem:[%s0 + $0xa0] sm:$0xff]
        %v311 = vld [vmem:[%s0 + $0xa8] sm:$0xff]
        %v312 = vld [vmem:[%s0 + $0xb0] sm:$0x1]
        %v313 = vld [vmem:[%s0 + $0xb1] sm:$0x1]
        %v314 = vld [vmem:[%s0 + $0xb2] sm:$0x1]
        %v315 = vld [vmem:[%s0 + $0xb3] sm:$0x1]
        %v316 = vld [vmem:[%s0 + $0xb4] sm:$0x1]
        %v317 = vld [vmem:[%s0 + $0xb5] sm:$0x1]
        %v318 = vld [vmem:[%s265] sm:$0xf]
        %v319 = vld [vmem:[%s265 + $0x4] sm:$0xf]
        %v320 = vld [vmem:[%s265 + $0x8] sm:$0xf]
        %v321 = vld [vmem:[%s265 + $0xc] sm:$0xf]
        %v322 = vld [vmem:[%s265 + $0x10] sm:$0xf]
        %v323 = vld [vmem:[%s265 + $0x14] sm:$0xf]
        %v324 = vld [vmem:[%s265 + $0x18] sm:$0xf]
        %v325 = vld [vmem:[%s265 + $0x1c] sm:$0xf]
        %v326 = vld [vmem:[%s265 + $0x20] sm:$0xf]
        %v327 = vld [vmem:[%s265 + $0x24] sm:$0xf]
        %v328 = vld [vmem:[%s265 + $0x28] sm:$0xf]
        %v329 = vld [vmem:[%s265 + $0x2c] sm:$0xf]
        %v330 = vld [vmem:[%s265 + $0x30] sm:$0xf]
        %v331 = vld [vmem:[%s265 + $0x34] sm:$0xf]
        %v332 = vld [vmem:[%s265 + $0x38] sm:$0xf]
        %v333 = vld [vmem:[%s265 + $0x3c] sm:$0xf]
        %v334 = vld [vmem:[%s270] sm:$0xf]
        %v335 = vld [vmem:[%s270 + $0x4] sm:$0xf]
        %v336 = vld [vmem:[%s270 + $0x8] sm:$0xf]
        %v337 = vld [vmem:[%s270 + $0xc] sm:$0xf]
        %v338 = vld [vmem:[%s270 + $0x10] sm:$0xf]
        %v339 = vld [vmem:[%s270 + $0x14] sm:$0xf]
        %v340 = vld [vmem:[%s270 + $0x18] sm:$0xf]
        %v341 = vld [vmem:[%s270 + $0x1c] sm:$0xf]
        %v342 = vld [vmem:[%s270 + $0x20] sm:$0xf]
        %v343 = vld [vmem:[%s270 + $0x24] sm:$0xf]
        %v344 = vld [vmem:[%s270 + $0x28] sm:$0xf]
        %v345 = vld [vmem:[%s270 + $0x2c] sm:$0xf]
        %v346 = vld [vmem:[%s270 + $0x30] sm:$0xf]
        %v347 = vld [vmem:[%s270 + $0x34] sm:$0xf]
        %v348 = vld [vmem:[%s270 + $0x38] sm:$0xf]
        %v349 = vld [vmem:[%s270 + $0x3c] sm:$0xf]
        %v350 = vlaneseq
        %v351 = vshrl.u32 %v350, 7
        %v352 = vsub.s32 0, %v351
        %v353 = vrot.slane %v312, %v352
        %v370 = vunpack.c.l.b16 %v318
        %v371 = vunpack.c.l.b16 %v319
        %v372 = vunpack.c.l.b16 %v320
        %v373 = vunpack.c.l.b16 %v321
        %v374 = vunpack.c.l.b16 %v322
        %v375 = vunpack.c.l.b16 %v323
        %v376 = vunpack.c.l.b16 %v324
        %v377 = vunpack.c.l.b16 %v325
        %v378 = vunpack.c.l.b16 %v326
        %v379 = vunpack.c.l.b16 %v327
        %v380 = vunpack.c.l.b16 %v328
        %v381 = vunpack.c.l.b16 %v329
        %v382 = vunpack.c.l.b16 %v330
        %v383 = vunpack.c.l.b16 %v331
        %v384 = vunpack.c.l.b16 %v332
        %v385 = vunpack.c.l.b16 %v333
        %v386 = vpack.c.b16 %v371, %v370
        %v387 = vpack.c.b16 %v373, %v372
        %v388 = vpack.c.b16 %v375, %v374
        %v389 = vpack.c.b16 %v377, %v376
        %v390 = vpack.c.b16 %v379, %v378
        %v391 = vpack.c.b16 %v381, %v380
        %v392 = vpack.c.b16 %v383, %v382
        %v393 = vpack.c.b16 %v385, %v384
        %vm394 = vcmask 392192
        %v396 = vsel %vm394, %v386, 0
        %v399 = vsel %vm394, %v387, 0
        %v402 = vsel %vm394, %v388, 0
        %v405 = vsel %vm394, %v389, 0
        %v408 = vsel %vm394, %v390, 0
        %v411 = vsel %vm394, %v391, 0
        %v414 = vsel %vm394, %v392, 0
        %v417 = vsel %vm394, %v393, 0
        %419 = vmatprep.subr.bf16.mxu0 0
        %420 = vmatpush1.bf16.msra.mxu0 0
        %421 = vmatprep.subr.bf16.mxu0 0
        %422 = vmatpush1.bf16.msra.mxu0 0
        %423 = vmatprep.subr.bf16.mxu0 0
        %424 = vmatpush1.bf16.msra.mxu0 0
        %425 = vmatprep.subr.bf16.mxu0 0
        %426 = vmatpush1.bf16.msra.mxu0 0
        %427 = vmatprep.subr.bf16.mxu0 0
        %428 = vmatpush1.bf16.msra.mxu0 0
        %429 = vmatprep.subr.bf16.mxu0 0
        %430 = vmatpush1.bf16.msra.mxu0 %v289
        %431 = vmatprep.subr.bf16.mxu0 0
        %432 = vmatpush1.bf16.msra.mxu0 %v288
        %433 = vmatprep.subr.bf16.mxu0 0
        %434 = vmatpush1.bf16.msra.mxu0 %v287
        %435 = vmatprep.subr.bf16.mxu0 0
        %436 = vmatpush2.bf16.msra.mxu0 0
        %437 = vmatprep.subr.bf16.mxu0 0
        %438 = vmatpush2.bf16.msra.mxu0 0
        %439 = vmatprep.subr.bf16.mxu0 0
        %440 = vmatpush2.bf16.msra.mxu0 0
        %441 = vmatprep.subr.bf16.mxu0 0
        %442 = vmatpush2.bf16.msra.mxu0 0
        %443 = vmatprep.subr.bf16.mxu0 0
        %444 = vmatpush2.bf16.msra.mxu0 0
        %445 = vmatprep.subr.bf16.mxu0 0
        %446 = vmatpush2.bf16.msra.mxu0 0
        %447 = vmatprep.subr.bf16.mxu0 0
        %448 = vmatpush2.bf16.msra.mxu0 0
        %449 = vmatprep.subr.bf16.mxu0 0
        %450 = vmatpush2.bf16.msra.mxu0 0
        %451 = vmatprep.mubr.bf16.mxu0 0
        %452 = vmatmul.mubr.bf16.gmra.mxu0 %v396
        %v453 = vpop.f32.mrf.mxu0
        %v454 = vadd.f32 %v353, %v453
        %v455 = vpop.f32.mrf.mxu0
        %v456 = vpop.f32.mrf.mxu0
        %v457 = vadd.f32 %v353, %v456
        %v458 = vpop.f32.mrf.mxu0
        %459 = vmatprep.mubr.bf16.mxu0 0
        %460 = vmatmul.mubr.bf16.gmra.mxu0 %v399
        %v461 = vpop.f32.mrf.mxu0
        %v462 = vadd.f32 %v353, %v461
        %v463 = vpop.f32.mrf.mxu0
        %v464 = vpop.f32.mrf.mxu0
        %v465 = vadd.f32 %v353, %v464
        %v466 = vpop.f32.mrf.mxu0
        %467 = vmatprep.mubr.bf16.mxu0 0
        %468 = vmatmul.mubr.bf16.gmra.mxu0 %v402
        %v469 = vpop.f32.mrf.mxu0
        %v470 = vadd.f32 %v353, %v469
        %v471 = vpop.f32.mrf.mxu0
        %v472 = vpop.f32.mrf.mxu0
        %v473 = vadd.f32 %v353, %v472
        %v474 = vpop.f32.mrf.mxu0
        %475 = vmatprep.mubr.bf16.mxu0 0
        %476 = vmatmul.mubr.bf16.gmra.mxu0 %v405
        %v477 = vpop.f32.mrf.mxu0
        %v478 = vadd.f32 %v353, %v477
        %v479 = vpop.f32.mrf.mxu0
        %v480 = vpop.f32.mrf.mxu0
        %v481 = vadd.f32 %v353, %v480
        %v482 = vpop.f32.mrf.mxu0
        %483 = vmatprep.mubr.bf16.mxu0 0
        %484 = vmatmul.mubr.bf16.gmra.mxu0 %v408
        %v485 = vpop.f32.mrf.mxu0
        %v486 = vadd.f32 %v353, %v485
        %v487 = vpop.f32.mrf.mxu0
        %v488 = vpop.f32.mrf.mxu0
        %v489 = vadd.f32 %v353, %v488
        %v490 = vpop.f32.mrf.mxu0
        %491 = vmatprep.mubr.bf16.mxu0 0
        %492 = vmatmul.mubr.bf16.gmra.mxu0 %v411
        %v493 = vpop.f32.mrf.mxu0
        %v494 = vadd.f32 %v353, %v493
        %v495 = vpop.f32.mrf.mxu0
        %v496 = vpop.f32.mrf.mxu0
        %v497 = vadd.f32 %v353, %v496
        %v498 = vpop.f32.mrf.mxu0
        %499 = vmatprep.mubr.bf16.mxu0 0
        %500 = vmatmul.mubr.bf16.gmra.mxu0 %v414
        %v501 = vpop.f32.mrf.mxu0
        %v502 = vadd.f32 %v353, %v501
        %v503 = vpop.f32.mrf.mxu0
        %v504 = vpop.f32.mrf.mxu0
        %v505 = vadd.f32 %v353, %v504
        %v506 = vpop.f32.mrf.mxu0
        %507 = vmatprep.mubr.bf16.mxu0 0
        %508 = vmatmul.mubr.bf16.gmra.mxu0 %v417
        %v509 = vpop.f32.mrf.mxu0
        %v510 = vadd.f32 %v353, %v509
        %v511 = vpop.f32.mrf.mxu0
        %v512 = vpop.f32.mrf.mxu0
        %v513 = vadd.f32 %v353, %v512
        %v514 = vpop.f32.mrf.mxu0
        %515 = vdwg.mxu0
        %v516 = vpack.c.bf16 %v457, %v454
        %v517 = vpack.c.bf16 %v465, %v462
        %v518 = vpack.c.bf16 %v473, %v470
        %v519 = vpack.c.bf16 %v481, %v478
        %v520 = vpack.c.bf16 %v489, %v486
        %v521 = vpack.c.bf16 %v497, %v494
        %v522 = vpack.c.bf16 %v505, %v502
        %v523 = vpack.c.bf16 %v513, %v510
        %v540 = vunpack.c.l.b16 %v334
        %v541 = vunpack.c.l.b16 %v335
        %v542 = vunpack.c.l.b16 %v336
        %v543 = vunpack.c.l.b16 %v337
        %v544 = vunpack.c.l.b16 %v338
        %v545 = vunpack.c.l.b16 %v339
        %v546 = vunpack.c.l.b16 %v340
        %v547 = vunpack.c.l.b16 %v341
        %v548 = vunpack.c.l.b16 %v342
        %v549 = vunpack.c.l.b16 %v343
        %v550 = vunpack.c.l.b16 %v344
        %v551 = vunpack.c.l.b16 %v345
        %v552 = vunpack.c.l.b16 %v346
        %v553 = vunpack.c.l.b16 %v347
        %v554 = vunpack.c.l.b16 %v348
        %v555 = vunpack.c.l.b16 %v349
        %v556 = vpack.c.b16 %v541, %v540
        %v557 = vpack.c.b16 %v543, %v542
        %v558 = vpack.c.b16 %v545, %v544
        %v559 = vpack.c.b16 %v547, %v546
        %v560 = vpack.c.b16 %v549, %v548
        %v561 = vpack.c.b16 %v551, %v550
        %v562 = vpack.c.b16 %v553, %v552
        %v563 = vpack.c.b16 %v555, %v554
        %572 = vmatprep.subr.bf16.mxu0 0
        %573 = vmatpush1.bf16.msra.mxu0 %v523
        %574 = vmatprep.subr.bf16.mxu0 0
        %575 = vmatpush1.bf16.msra.mxu0 %v522
        %576 = vmatprep.subr.bf16.mxu0 0
        %577 = vmatpush1.bf16.msra.mxu0 %v521
        %578 = vmatprep.subr.bf16.mxu0 0
        %579 = vmatpush1.bf16.msra.mxu0 %v520
        %580 = vmatprep.subr.bf16.mxu0 0
        %581 = vmatpush1.bf16.msra.mxu0 %v519
        %582 = vmatprep.subr.bf16.mxu0 0
        %583 = vmatpush1.bf16.msra.mxu0 %v518
        %584 = vmatprep.subr.bf16.mxu0 0
        %585 = vmatpush1.bf16.msra.mxu0 %v517
        %586 = vmatprep.subr.bf16.mxu0 0
        %587 = vmatpush1.bf16.msra.mxu0 %v516
        %588 = vmatprep.subr.bf16.mxu0 0
        %589 = vmatpush2.bf16.msra.mxu0 0
        %590 = vmatprep.subr.bf16.mxu0 0
        %591 = vmatpush2.bf16.msra.mxu0 0
        %592 = vmatprep.subr.bf16.mxu0 0
        %593 = vmatpush2.bf16.msra.mxu0 0
        %594 = vmatprep.subr.bf16.mxu0 0
        %595 = vmatpush2.bf16.msra.mxu0 0
        %596 = vmatprep.subr.bf16.mxu0 0
        %597 = vmatpush2.bf16.msra.mxu0 0
        %598 = vmatprep.subr.bf16.mxu0 0
        %599 = vmatpush2.bf16.msra.mxu0 0
        %600 = vmatprep.subr.bf16.mxu0 0
        %601 = vmatpush2.bf16.msra.mxu0 0
        %602 = vmatprep.subr.bf16.mxu0 0
        %603 = vmatpush2.bf16.msra.mxu0 0
        %604 = vmatprep.mubr.bf16.mxu0 0
        %605 = vmatmul.mubr.bf16.gmra.mxu0 %v556
        %v606 = vpop.f32.mrf.mxu0
        %v607 = vadd.f32 0.0, %v606
        %v608 = vpop.f32.mrf.mxu0
        %v609 = vpop.f32.mrf.mxu0
        %v610 = vadd.f32 0.0, %v609
        %v611 = vpop.f32.mrf.mxu0
        %612 = vmatprep.mubr.bf16.mxu0 0
        %613 = vmatmul.mubr.bf16.gmra.mxu0 %v557
        %v614 = vpop.f32.mrf.mxu0
        %v615 = vadd.f32 0.0, %v614
        %v616 = vpop.f32.mrf.mxu0
        %v617 = vpop.f32.mrf.mxu0
        %v618 = vadd.f32 0.0, %v617
        %v619 = vpop.f32.mrf.mxu0
        %620 = vmatprep.mubr.bf16.mxu0 0
        %621 = vmatmul.mubr.bf16.gmra.mxu0 %v558
        %v622 = vpop.f32.mrf.mxu0
        %v623 = vadd.f32 0.0, %v622
        %v624 = vpop.f32.mrf.mxu0
        %v625 = vpop.f32.mrf.mxu0
        %v626 = vadd.f32 0.0, %v625
        %v627 = vpop.f32.mrf.mxu0
        %628 = vmatprep.mubr.bf16.mxu0 0
        %629 = vmatmul.mubr.bf16.gmra.mxu0 %v559
        %v630 = vpop.f32.mrf.mxu0
        %v631 = vadd.f32 0.0, %v630
        %v632 = vpop.f32.mrf.mxu0
        %v633 = vpop.f32.mrf.mxu0
        %v634 = vadd.f32 0.0, %v633
        %v635 = vpop.f32.mrf.mxu0
        %636 = vmatprep.mubr.bf16.mxu0 0
        %637 = vmatmul.mubr.bf16.gmra.mxu0 %v560
        %v638 = vpop.f32.mrf.mxu0
        %v639 = vadd.f32 0.0, %v638
        %v640 = vpop.f32.mrf.mxu0
        %v641 = vpop.f32.mrf.mxu0
        %v642 = vadd.f32 0.0, %v641
        %v643 = vpop.f32.mrf.mxu0
        %644 = vmatprep.mubr.bf16.mxu0 0
        %645 = vmatmul.mubr.bf16.gmra.mxu0 %v561
        %v646 = vpop.f32.mrf.mxu0
        %v647 = vadd.f32 0.0, %v646
        %v648 = vpop.f32.mrf.mxu0
        %v649 = vpop.f32.mrf.mxu0
        %v650 = vadd.f32 0.0, %v649
        %v651 = vpop.f32.mrf.mxu0
        %652 = vmatprep.mubr.bf16.mxu0 0
        %653 = vmatmul.mubr.bf16.gmra.mxu0 %v562
        %v654 = vpop.f32.mrf.mxu0
        %v655 = vadd.f32 0.0, %v654
        %v656 = vpop.f32.mrf.mxu0
        %v657 = vpop.f32.mrf.mxu0
        %v658 = vadd.f32 0.0, %v657
        %v659 = vpop.f32.mrf.mxu0
        %660 = vmatprep.mubr.bf16.mxu0 0
        %661 = vmatmul.mubr.bf16.gmra.mxu0 %v563
        %v662 = vpop.f32.mrf.mxu0
        %v663 = vadd.f32 0.0, %v662
        %v664 = vpop.f32.mrf.mxu0
        %v665 = vpop.f32.mrf.mxu0
        %v666 = vadd.f32 0.0, %v665
        %v667 = vpop.f32.mrf.mxu0
        %668 = vdwg.mxu0
        %685 = vrot.lane.b32.xlu0 %v454, 32
        %v686 = vpop.permute.xlu0 %685
        %687 = vrot.lane.b32.xlu0 %v457, 32
        %v688 = vpop.permute.xlu0 %687
        %689 = vrot.lane.b32.xlu0 %v462, 32
        %v690 = vpop.permute.xlu0 %689
        %691 = vrot.lane.b32.xlu0 %v465, 32
        %v692 = vpop.permute.xlu0 %691
        %693 = vrot.lane.b32.xlu0 %v470, 32
        %v694 = vpop.permute.xlu0 %693
        %695 = vrot.lane.b32.xlu0 %v473, 32
        %v696 = vpop.permute.xlu0 %695
        %697 = vrot.lane.b32.xlu0 %v478, 32
        %v698 = vpop.permute.xlu0 %697
        %699 = vrot.lane.b32.xlu0 %v481, 32
        %v700 = vpop.permute.xlu0 %699
        %701 = vrot.lane.b32.xlu0 %v486, 32
        %v702 = vpop.permute.xlu0 %701
        %703 = vrot.lane.b32.xlu0 %v489, 32
        %v704 = vpop.permute.xlu0 %703
        %705 = vrot.lane.b32.xlu0 %v494, 32
        %v706 = vpop.permute.xlu0 %705
        %707 = vrot.lane.b32.xlu0 %v497, 32
        %v708 = vpop.permute.xlu0 %707
        %709 = vrot.lane.b32.xlu0 %v502, 32
        %v710 = vpop.permute.xlu0 %709
        %711 = vrot.lane.b32.xlu0 %v505, 32
        %v712 = vpop.permute.xlu0 %711
        %713 = vrot.lane.b32.xlu0 %v510, 32
        %v714 = vpop.permute.xlu0 %713
        %715 = vrot.lane.b32.xlu0 %v513, 32
        %v716 = vpop.permute.xlu0 %715
        %vm733 = vcmask 261120
        %v734 = vsel %vm733, %v607, %v686
        %v735 = vsel %vm733, %v610, %v688
        %v736 = vsel %vm733, %v615, %v690
        %v737 = vsel %vm733, %v618, %v692
        %v738 = vsel %vm733, %v623, %v694
        %v739 = vsel %vm733, %v626, %v696
        %v740 = vsel %vm733, %v631, %v698
        %v741 = vsel %vm733, %v634, %v700
        %v742 = vsel %vm733, %v639, %v702
        %v743 = vsel %vm733, %v642, %v704
        %v744 = vsel %vm733, %v647, %v706
        %v745 = vsel %vm733, %v650, %v708
        %v746 = vsel %vm733, %v655, %v710
        %v747 = vsel %vm733, %v658, %v712
        %v748 = vsel %vm733, %v663, %v714
        %v749 = vsel %vm733, %v666, %v716
        %v750 = vpack.c.bf16 %v735, %v734
        %v751 = vpack.c.bf16 %v737, %v736
        %v752 = vpack.c.bf16 %v739, %v738
        %v753 = vpack.c.bf16 %v741, %v740
        %v754 = vpack.c.bf16 %v743, %v742
        %v755 = vpack.c.bf16 %v745, %v744
        %v756 = vpack.c.bf16 %v747, %v746
        %v757 = vpack.c.bf16 %v749, %v748
        %v758 = vlaneseq
        %v759 = vshrl.u32 %v758, 7
        %v760 = vsub.s32 0, %v759
        %v761 = vrot.slane %v313, %v760
        %vm762 = vcmask 523264
        %v764 = vsel %vm762, %v750, 0
        %v767 = vsel %vm762, %v751, 0
        %v770 = vsel %vm762, %v752, 0
        %v773 = vsel %vm762, %v753, 0
        %v776 = vsel %vm762, %v754, 0
        %v779 = vsel %vm762, %v755, 0
        %v782 = vsel %vm762, %v756, 0
        %v785 = vsel %vm762, %v757, 0
        %787 = vmatprep.subr.bf16.mxu0 0
        %788 = vmatpush1.bf16.msra.mxu0 0
        %789 = vmatprep.subr.bf16.mxu0 0
        %790 = vmatpush1.bf16.msra.mxu0 0
        %791 = vmatprep.subr.bf16.mxu0 0
        %792 = vmatpush1.bf16.msra.mxu0 0
        %793 = vmatprep.subr.bf16.mxu0 0
        %794 = vmatpush1.bf16.msra.mxu0 0
        %795 = vmatprep.subr.bf16.mxu0 0
        %796 = vmatpush1.bf16.msra.mxu0 %v301
        %797 = vmatprep.subr.bf16.mxu0 0
        %798 = vmatpush1.bf16.msra.mxu0 %v300
        %799 = vmatprep.subr.bf16.mxu0 0
        %800 = vmatpush1.bf16.msra.mxu0 %v299
        %801 = vmatprep.subr.bf16.mxu0 0
        %802 = vmatpush1.bf16.msra.mxu0 %v298
        %803 = vmatprep.subr.bf16.mxu0 0
        %804 = vmatpush2.bf16.msra.mxu0 0
        %805 = vmatprep.subr.bf16.mxu0 0
        %806 = vmatpush2.bf16.msra.mxu0 0
        %807 = vmatprep.subr.bf16.mxu0 0
        %808 = vmatpush2.bf16.msra.mxu0 0
        %809 = vmatprep.subr.bf16.mxu0 0
        %810 = vmatpush2.bf16.msra.mxu0 0
        %811 = vmatprep.subr.bf16.mxu0 0
        %812 = vmatpush2.bf16.msra.mxu0 0
        %813 = vmatprep.subr.bf16.mxu0 0
        %814 = vmatpush2.bf16.msra.mxu0 0
        %815 = vmatprep.subr.bf16.mxu0 0
        %816 = vmatpush2.bf16.msra.mxu0 0
        %817 = vmatprep.subr.bf16.mxu0 0
        %818 = vmatpush2.bf16.msra.mxu0 0
        %819 = vmatprep.mubr.bf16.mxu0 0
        %820 = vmatmul.mubr.bf16.gmra.mxu0 %v764
        %v821 = vpop.f32.mrf.mxu0
        %v822 = vadd.f32 %v761, %v821
        %v823 = vpop.f32.mrf.mxu0
        %v824 = vpop.f32.mrf.mxu0
        %v825 = vadd.f32 %v761, %v824
        %v826 = vpop.f32.mrf.mxu0
        %827 = vmatprep.mubr.bf16.mxu0 0
        %828 = vmatmul.mubr.bf16.gmra.mxu0 %v767
        %v829 = vpop.f32.mrf.mxu0
        %v830 = vadd.f32 %v761, %v829
        %v831 = vpop.f32.mrf.mxu0
        %v832 = vpop.f32.mrf.mxu0
        %v833 = vadd.f32 %v761, %v832
        %v834 = vpop.f32.mrf.mxu0
        %835 = vmatprep.mubr.bf16.mxu0 0
        %836 = vmatmul.mubr.bf16.gmra.mxu0 %v770
        %v837 = vpop.f32.mrf.mxu0
        %v838 = vadd.f32 %v761, %v837
        %v839 = vpop.f32.mrf.mxu0
        %v840 = vpop.f32.mrf.mxu0
        %v841 = vadd.f32 %v761, %v840
        %v842 = vpop.f32.mrf.mxu0
        %843 = vmatprep.mubr.bf16.mxu0 0
        %844 = vmatmul.mubr.bf16.gmra.mxu0 %v773
        %v845 = vpop.f32.mrf.mxu0
        %v846 = vadd.f32 %v761, %v845
        %v847 = vpop.f32.mrf.mxu0
        %v848 = vpop.f32.mrf.mxu0
        %v849 = vadd.f32 %v761, %v848
        %v850 = vpop.f32.mrf.mxu0
        %851 = vmatprep.mubr.bf16.mxu0 0
        %852 = vmatmul.mubr.bf16.gmra.mxu0 %v776
        %v853 = vpop.f32.mrf.mxu0
        %v854 = vadd.f32 %v761, %v853
        %v855 = vpop.f32.mrf.mxu0
        %v856 = vpop.f32.mrf.mxu0
        %v857 = vadd.f32 %v761, %v856
        %v858 = vpop.f32.mrf.mxu0
        %859 = vmatprep.mubr.bf16.mxu0 0
        %860 = vmatmul.mubr.bf16.gmra.mxu0 %v779
        %v861 = vpop.f32.mrf.mxu0
        %v862 = vadd.f32 %v761, %v861
        %v863 = vpop.f32.mrf.mxu0
        %v864 = vpop.f32.mrf.mxu0
        %v865 = vadd.f32 %v761, %v864
        %v866 = vpop.f32.mrf.mxu0
        %867 = vmatprep.mubr.bf16.mxu0 0
        %868 = vmatmul.mubr.bf16.gmra.mxu0 %v782
        %v869 = vpop.f32.mrf.mxu0
        %v870 = vadd.f32 %v761, %v869
        %v871 = vpop.f32.mrf.mxu0
        %v872 = vpop.f32.mrf.mxu0
        %v873 = vadd.f32 %v761, %v872
        %v874 = vpop.f32.mrf.mxu0
        %875 = vmatprep.mubr.bf16.mxu0 0
        %876 = vmatmul.mubr.bf16.gmra.mxu0 %v785
        %v877 = vpop.f32.mrf.mxu0
        %v878 = vadd.f32 %v761, %v877
        %v879 = vpop.f32.mrf.mxu0
        %v880 = vpop.f32.mrf.mxu0
        %v881 = vadd.f32 %v761, %v880
        %v882 = vpop.f32.mrf.mxu0
        %883 = vdwg.mxu0
        %v884 = vxor.u32 %v822, 2147483648
        %v885 = vxor.u32 %v825, 2147483648
        %v886 = vxor.u32 %v830, 2147483648
        %v887 = vxor.u32 %v833, 2147483648
        %v888 = vxor.u32 %v838, 2147483648
        %v889 = vxor.u32 %v841, 2147483648
        %v890 = vxor.u32 %v846, 2147483648
        %v891 = vxor.u32 %v849, 2147483648
        %v892 = vxor.u32 %v854, 2147483648
        %v893 = vxor.u32 %v857, 2147483648
        %v894 = vxor.u32 %v862, 2147483648
        %v895 = vxor.u32 %v865, 2147483648
        %v896 = vxor.u32 %v870, 2147483648
        %v897 = vxor.u32 %v873, 2147483648
        %v898 = vxor.u32 %v878, 2147483648
        %v899 = vxor.u32 %v881, 2147483648
        %v900 = vmul.f32 %v884, 1.442695
        %v901 = vpow.pop %v900
        %v902 = vmul.f32 %v885, 1.442695
        %v903 = vpow.pop %v902
        %v904 = vmul.f32 %v886, 1.442695
        %v905 = vpow.pop %v904
        %v906 = vmul.f32 %v887, 1.442695
        %v907 = vpow.pop %v906
        %v908 = vmul.f32 %v888, 1.442695
        %v909 = vpow.pop %v908
        %v910 = vmul.f32 %v889, 1.442695
        %v911 = vpow.pop %v910
        %v912 = vmul.f32 %v890, 1.442695
        %v913 = vpow.pop %v912
        %v914 = vmul.f32 %v891, 1.442695
        %v915 = vpow.pop %v914
        %v916 = vmul.f32 %v892, 1.442695
        %v917 = vpow.pop %v916
        %v918 = vmul.f32 %v893, 1.442695
        %v919 = vpow.pop %v918
        %v920 = vmul.f32 %v894, 1.442695
        %v921 = vpow.pop %v920
        %v922 = vmul.f32 %v895, 1.442695
        %v923 = vpow.pop %v922
        %v924 = vmul.f32 %v896, 1.442695
        %v925 = vpow.pop %v924
        %v926 = vmul.f32 %v897, 1.442695
        %v927 = vpow.pop %v926
        %v928 = vmul.f32 %v898, 1.442695
        %v929 = vpow.pop %v928
        %v930 = vmul.f32 %v899, 1.442695
        %v931 = vpow.pop %v930
        %v932 = vadd.f32 %v901, 1.0
        %v933 = vadd.f32 %v903, 1.0
        %v934 = vadd.f32 %v905, 1.0
        %v935 = vadd.f32 %v907, 1.0
        %v936 = vadd.f32 %v909, 1.0
        %v937 = vadd.f32 %v911, 1.0
        %v938 = vadd.f32 %v913, 1.0
        %v939 = vadd.f32 %v915, 1.0
        %v940 = vadd.f32 %v917, 1.0
        %v941 = vadd.f32 %v919, 1.0
        %v942 = vadd.f32 %v921, 1.0
        %v943 = vadd.f32 %v923, 1.0
        %v944 = vadd.f32 %v925, 1.0
        %v945 = vadd.f32 %v927, 1.0
        %v946 = vadd.f32 %v929, 1.0
        %v947 = vadd.f32 %v931, 1.0
        %v948 = vrcp.pop %v932
        %v949 = vmul.f32 1.0, %v948
        %v950 = vrcp.pop %v933
        %v951 = vmul.f32 1.0, %v950
        %v952 = vrcp.pop %v934
        %v953 = vmul.f32 1.0, %v952
        %v954 = vrcp.pop %v935
        %v955 = vmul.f32 1.0, %v954
        %v956 = vrcp.pop %v936
        %v957 = vmul.f32 1.0, %v956
        %v958 = vrcp.pop %v937
        %v959 = vmul.f32 1.0, %v958
        %v960 = vrcp.pop %v938
        %v961 = vmul.f32 1.0, %v960
        %v962 = vrcp.pop %v939
        %v963 = vmul.f32 1.0, %v962
        %v964 = vrcp.pop %v940
        %v965 = vmul.f32 1.0, %v964
        %v966 = vrcp.pop %v941
        %v967 = vmul.f32 1.0, %v966
        %v968 = vrcp.pop %v942
        %v969 = vmul.f32 1.0, %v968
        %v970 = vrcp.pop %v943
        %v971 = vmul.f32 1.0, %v970
        %v972 = vrcp.pop %v944
        %v973 = vmul.f32 1.0, %v972
        %v974 = vrcp.pop %v945
        %v975 = vmul.f32 1.0, %v974
        %v976 = vrcp.pop %v946
        %v977 = vmul.f32 1.0, %v976
        %v978 = vrcp.pop %v947
        %v979 = vmul.f32 1.0, %v978
        %996 = vrot.lane.b32.xlu0 %v822, 32
        %v997 = vpop.permute.xlu0 %996
        %998 = vrot.lane.b32.xlu0 %v825, 32
        %v999 = vpop.permute.xlu0 %998
        %1000 = vrot.lane.b32.xlu0 %v830, 32
        %v1001 = vpop.permute.xlu0 %1000
        %1002 = vrot.lane.b32.xlu0 %v833, 32
        %v1003 = vpop.permute.xlu0 %1002
        %1004 = vrot.lane.b32.xlu0 %v838, 32
        %v1005 = vpop.permute.xlu0 %1004
        %1006 = vrot.lane.b32.xlu0 %v841, 32
        %v1007 = vpop.permute.xlu0 %1006
        %1008 = vrot.lane.b32.xlu0 %v846, 32
        %v1009 = vpop.permute.xlu0 %1008
        %1010 = vrot.lane.b32.xlu0 %v849, 32
        %v1011 = vpop.permute.xlu0 %1010
        %1012 = vrot.lane.b32.xlu0 %v854, 32
        %v1013 = vpop.permute.xlu0 %1012
        %1014 = vrot.lane.b32.xlu0 %v857, 32
        %v1015 = vpop.permute.xlu0 %1014
        %1016 = vrot.lane.b32.xlu0 %v862, 32
        %v1017 = vpop.permute.xlu0 %1016
        %1018 = vrot.lane.b32.xlu0 %v865, 32
        %v1019 = vpop.permute.xlu0 %1018
        %1020 = vrot.lane.b32.xlu0 %v870, 32
        %v1021 = vpop.permute.xlu0 %1020
        %1022 = vrot.lane.b32.xlu0 %v873, 32
        %v1023 = vpop.permute.xlu0 %1022
        %1024 = vrot.lane.b32.xlu0 %v878, 32
        %v1025 = vpop.permute.xlu0 %1024
        %1026 = vrot.lane.b32.xlu0 %v881, 32
        %v1027 = vpop.permute.xlu0 %1026
        %v1044 = vmul.f32 %v949, %v997
        %v1045 = vmul.f32 %v951, %v999
        %v1046 = vmul.f32 %v953, %v1001
        %v1047 = vmul.f32 %v955, %v1003
        %v1048 = vmul.f32 %v957, %v1005
        %v1049 = vmul.f32 %v959, %v1007
        %v1050 = vmul.f32 %v961, %v1009
        %v1051 = vmul.f32 %v963, %v1011
        %v1052 = vmul.f32 %v965, %v1013
        %v1053 = vmul.f32 %v967, %v1015
        %v1054 = vmul.f32 %v969, %v1017
        %v1055 = vmul.f32 %v971, %v1019
        %v1056 = vmul.f32 %v973, %v1021
        %v1057 = vmul.f32 %v975, %v1023
        %v1058 = vmul.f32 %v977, %v1025
        %v1059 = vmul.f32 %v979, %v1027
        %1076 = vrot.lane.b32.xlu0 %v1044, 64
        %v1077 = vpop.permute.xlu0 %1076
        %1078 = vrot.lane.b32.xlu0 %v1045, 64
        %v1079 = vpop.permute.xlu0 %1078
        %1080 = vrot.lane.b32.xlu0 %v1046, 64
        %v1081 = vpop.permute.xlu0 %1080
        %1082 = vrot.lane.b32.xlu0 %v1047, 64
        %v1083 = vpop.permute.xlu0 %1082
        %1084 = vrot.lane.b32.xlu0 %v1048, 64
        %v1085 = vpop.permute.xlu0 %1084
        %1086 = vrot.lane.b32.xlu0 %v1049, 64
        %v1087 = vpop.permute.xlu0 %1086
        %1088 = vrot.lane.b32.xlu0 %v1050, 64
        %v1089 = vpop.permute.xlu0 %1088
        %1090 = vrot.lane.b32.xlu0 %v1051, 64
        %v1091 = vpop.permute.xlu0 %1090
        %1092 = vrot.lane.b32.xlu0 %v1052, 64
        %v1093 = vpop.permute.xlu0 %1092
        %1094 = vrot.lane.b32.xlu0 %v1053, 64
        %v1095 = vpop.permute.xlu0 %1094
        %1096 = vrot.lane.b32.xlu0 %v1054, 64
        %v1097 = vpop.permute.xlu0 %1096
        %1098 = vrot.lane.b32.xlu0 %v1055, 64
        %v1099 = vpop.permute.xlu0 %1098
        %1100 = vrot.lane.b32.xlu0 %v1056, 64
        %v1101 = vpop.permute.xlu0 %1100
        %1102 = vrot.lane.b32.xlu0 %v1057, 64
        %v1103 = vpop.permute.xlu0 %1102
        %1104 = vrot.lane.b32.xlu0 %v1058, 64
        %v1105 = vpop.permute.xlu0 %1104
        %1106 = vrot.lane.b32.xlu0 %v1059, 64
        %v1107 = vpop.permute.xlu0 %1106
        %v1124 = vadd.f32 %v822, %v1077
        %v1125 = vadd.f32 %v825, %v1079
        %v1126 = vadd.f32 %v830, %v1081
        %v1127 = vadd.f32 %v833, %v1083
        %v1128 = vadd.f32 %v838, %v1085
        %v1129 = vadd.f32 %v841, %v1087
        %v1130 = vadd.f32 %v846, %v1089
        %v1131 = vadd.f32 %v849, %v1091
        %v1132 = vadd.f32 %v854, %v1093
        %v1133 = vadd.f32 %v857, %v1095
        %v1134 = vadd.f32 %v862, %v1097
        %v1135 = vadd.f32 %v865, %v1099
        %v1136 = vadd.f32 %v870, %v1101
        %v1137 = vadd.f32 %v873, %v1103
        %v1138 = vadd.f32 %v878, %v1105
        %v1139 = vadd.f32 %v881, %v1107
        %v1140 = vtanh.pop %v1124
        %v1141 = vtanh.pop %v1125
        %v1142 = vtanh.pop %v1126
        %v1143 = vtanh.pop %v1127
        %v1144 = vtanh.pop %v1128
        %v1145 = vtanh.pop %v1129
        %v1146 = vtanh.pop %v1130
        %v1147 = vtanh.pop %v1131
        %v1148 = vtanh.pop %v1132
        %v1149 = vtanh.pop %v1133
        %v1150 = vtanh.pop %v1134
        %v1151 = vtanh.pop %v1135
        %v1152 = vtanh.pop %v1136
        %v1153 = vtanh.pop %v1137
        %v1154 = vtanh.pop %v1138
        %v1155 = vtanh.pop %v1139
        %v1156 = vsub.f32 1.0, %v949
        %v1157 = vsub.f32 1.0, %v951
        %v1158 = vsub.f32 1.0, %v953
        %v1159 = vsub.f32 1.0, %v955
        %v1160 = vsub.f32 1.0, %v957
        %v1161 = vsub.f32 1.0, %v959
        %v1162 = vsub.f32 1.0, %v961
        %v1163 = vsub.f32 1.0, %v963
        %v1164 = vsub.f32 1.0, %v965
        %v1165 = vsub.f32 1.0, %v967
        %v1166 = vsub.f32 1.0, %v969
        %v1167 = vsub.f32 1.0, %v971
        %v1168 = vsub.f32 1.0, %v973
        %v1169 = vsub.f32 1.0, %v975
        %v1170 = vsub.f32 1.0, %v977
        %v1171 = vsub.f32 1.0, %v979
        %1188 = vrot.lane.b32.xlu0 %v1140, 96
        %v1189 = vpop.permute.xlu0 %1188
        %1190 = vrot.lane.b32.xlu0 %v1141, 96
        %v1191 = vpop.permute.xlu0 %1190
        %1192 = vrot.lane.b32.xlu0 %v1142, 96
        %v1193 = vpop.permute.xlu0 %1192
        %1194 = vrot.lane.b32.xlu0 %v1143, 96
        %v1195 = vpop.permute.xlu0 %1194
        %1196 = vrot.lane.b32.xlu0 %v1144, 96
        %v1197 = vpop.permute.xlu0 %1196
        %1198 = vrot.lane.b32.xlu0 %v1145, 96
        %v1199 = vpop.permute.xlu0 %1198
        %1200 = vrot.lane.b32.xlu0 %v1146, 96
        %v1201 = vpop.permute.xlu0 %1200
        %1202 = vrot.lane.b32.xlu0 %v1147, 96
        %v1203 = vpop.permute.xlu0 %1202
        %1204 = vrot.lane.b32.xlu0 %v1148, 96
        %v1205 = vpop.permute.xlu0 %1204
        %1206 = vrot.lane.b32.xlu0 %v1149, 96
        %v1207 = vpop.permute.xlu0 %1206
        %1208 = vrot.lane.b32.xlu0 %v1150, 96
        %v1209 = vpop.permute.xlu0 %1208
        %1210 = vrot.lane.b32.xlu0 %v1151, 96
        %v1211 = vpop.permute.xlu0 %1210
        %1212 = vrot.lane.b32.xlu0 %v1152, 96
        %v1213 = vpop.permute.xlu0 %1212
        %1214 = vrot.lane.b32.xlu0 %v1153, 96
        %v1215 = vpop.permute.xlu0 %1214
        %1216 = vrot.lane.b32.xlu0 %v1154, 96
        %v1217 = vpop.permute.xlu0 %1216
        %1218 = vrot.lane.b32.xlu0 %v1155, 96
        %v1219 = vpop.permute.xlu0 %1218
        %v1236 = vmul.f32 %v1156, %v1189
        %v1237 = vmul.f32 %v1157, %v1191
        %v1238 = vmul.f32 %v1158, %v1193
        %v1239 = vmul.f32 %v1159, %v1195
        %v1240 = vmul.f32 %v1160, %v1197
        %v1241 = vmul.f32 %v1161, %v1199
        %v1242 = vmul.f32 %v1162, %v1201
        %v1243 = vmul.f32 %v1163, %v1203
        %v1244 = vmul.f32 %v1164, %v1205
        %v1245 = vmul.f32 %v1165, %v1207
        %v1246 = vmul.f32 %v1166, %v1209
        %v1247 = vmul.f32 %v1167, %v1211
        %v1248 = vmul.f32 %v1168, %v1213
        %v1249 = vmul.f32 %v1169, %v1215
        %v1250 = vmul.f32 %v1170, %v1217
        %v1251 = vmul.f32 %v1171, %v1219
        %v1252 = vmul.f32 %v949, %v686
        %v1253 = vmul.f32 %v951, %v688
        %v1254 = vmul.f32 %v953, %v690
        %v1255 = vmul.f32 %v955, %v692
        %v1256 = vmul.f32 %v957, %v694
        %v1257 = vmul.f32 %v959, %v696
        %v1258 = vmul.f32 %v961, %v698
        %v1259 = vmul.f32 %v963, %v700
        %v1260 = vmul.f32 %v965, %v702
        %v1261 = vmul.f32 %v967, %v704
        %v1262 = vmul.f32 %v969, %v706
        %v1263 = vmul.f32 %v971, %v708
        %v1264 = vmul.f32 %v973, %v710
        %v1265 = vmul.f32 %v975, %v712
        %v1266 = vmul.f32 %v977, %v714
        %v1267 = vmul.f32 %v979, %v716
        %v1268 = vadd.f32 %v1236, %v1252
        %v1269 = vadd.f32 %v1237, %v1253
        %v1270 = vadd.f32 %v1238, %v1254
        %v1271 = vadd.f32 %v1239, %v1255
        %v1272 = vadd.f32 %v1240, %v1256
        %v1273 = vadd.f32 %v1241, %v1257
        %v1274 = vadd.f32 %v1242, %v1258
        %v1275 = vadd.f32 %v1243, %v1259
        %v1276 = vadd.f32 %v1244, %v1260
        %v1277 = vadd.f32 %v1245, %v1261
        %v1278 = vadd.f32 %v1246, %v1262
        %v1279 = vadd.f32 %v1247, %v1263
        %v1280 = vadd.f32 %v1248, %v1264
        %v1281 = vadd.f32 %v1249, %v1265
        %v1282 = vadd.f32 %v1250, %v1266
        %v1283 = vadd.f32 %v1251, %v1267
        %v1284 = vpack.c.bf16 %v1269, %v1268
        %v1285 = vpack.c.bf16 %v1271, %v1270
        %v1286 = vpack.c.bf16 %v1273, %v1272
        %v1287 = vpack.c.bf16 %v1275, %v1274
        %v1288 = vpack.c.bf16 %v1277, %v1276
        %v1289 = vpack.c.bf16 %v1279, %v1278
        %v1290 = vpack.c.bf16 %v1281, %v1280
        %v1291 = vpack.c.bf16 %v1283, %v1282
        %v1292 = vlaneseq
        %v1293 = vshrl.u32 %v1292, 7
        %v1294 = vsub.s32 0, %v1293
        %v1295 = vrot.slane %v314, %v1294
        %1304 = vrot.lane.b32.xlu0 %v1284, 96
        %v1305 = vpop.permute.xlu0 %1304
        %1306 = vrot.lane.b32.xlu0 %v1285, 96
        %v1307 = vpop.permute.xlu0 %1306
        %1308 = vrot.lane.b32.xlu0 %v1286, 96
        %v1309 = vpop.permute.xlu0 %1308
        %1310 = vrot.lane.b32.xlu0 %v1287, 96
        %v1311 = vpop.permute.xlu0 %1310
        %1312 = vrot.lane.b32.xlu0 %v1288, 96
        %v1313 = vpop.permute.xlu0 %1312
        %1314 = vrot.lane.b32.xlu0 %v1289, 96
        %v1315 = vpop.permute.xlu0 %1314
        %1316 = vrot.lane.b32.xlu0 %v1290, 96
        %v1317 = vpop.permute.xlu0 %1316
        %1318 = vrot.lane.b32.xlu0 %v1291, 96
        %v1319 = vpop.permute.xlu0 %1318
        %v1321 = vsel %vm733, %v1305, 0
        %v1324 = vsel %vm733, %v1307, 0
        %v1327 = vsel %vm733, %v1309, 0
        %v1330 = vsel %vm733, %v1311, 0
        %v1333 = vsel %vm733, %v1313, 0
        %v1336 = vsel %vm733, %v1315, 0
        %v1339 = vsel %vm733, %v1317, 0
        %v1342 = vsel %vm733, %v1319, 0
        %1344 = vmatprep.subr.bf16.mxu0 0
        %1345 = vmatpush1.bf16.msra.mxu0 0
        %1346 = vmatprep.subr.bf16.mxu0 0
        %1347 = vmatpush1.bf16.msra.mxu0 0
        %1348 = vmatprep.subr.bf16.mxu0 0
        %1349 = vmatpush1.bf16.msra.mxu0 0
        %1350 = vmatprep.subr.bf16.mxu0 0
        %1351 = vmatpush1.bf16.msra.mxu0 0
        %1352 = vmatprep.subr.bf16.mxu0 0
        %1353 = vmatpush1.bf16.msra.mxu0 0
        %1354 = vmatprep.subr.bf16.mxu0 0
        %1355 = vmatpush1.bf16.msra.mxu0 0
        %1356 = vmatprep.subr.bf16.mxu0 0
        %1357 = vmatpush1.bf16.msra.mxu0 %v307
        %1358 = vmatprep.subr.bf16.mxu0 0
        %1359 = vmatpush1.bf16.msra.mxu0 %v306
        %1360 = vmatprep.subr.bf16.mxu0 0
        %1361 = vmatpush2.bf16.msra.mxu0 0
        %1362 = vmatprep.subr.bf16.mxu0 0
        %1363 = vmatpush2.bf16.msra.mxu0 0
        %1364 = vmatprep.subr.bf16.mxu0 0
        %1365 = vmatpush2.bf16.msra.mxu0 0
        %1366 = vmatprep.subr.bf16.mxu0 0
        %1367 = vmatpush2.bf16.msra.mxu0 0
        %1368 = vmatprep.subr.bf16.mxu0 0
        %1369 = vmatpush2.bf16.msra.mxu0 0
        %1370 = vmatprep.subr.bf16.mxu0 0
        %1371 = vmatpush2.bf16.msra.mxu0 0
        %1372 = vmatprep.subr.bf16.mxu0 0
        %1373 = vmatpush2.bf16.msra.mxu0 0
        %1374 = vmatprep.subr.bf16.mxu0 0
        %1375 = vmatpush2.bf16.msra.mxu0 0
        %1376 = vmatprep.mubr.bf16.mxu0 0
        %1377 = vmatmul.mubr.bf16.gmra.mxu0 %v1321
        %v1378 = vpop.f32.mrf.mxu0
        %v1379 = vadd.f32 %v1295, %v1378
        %v1380 = vpop.f32.mrf.mxu0
        %v1381 = vpop.f32.mrf.mxu0
        %v1382 = vadd.f32 %v1295, %v1381
        %v1383 = vpop.f32.mrf.mxu0
        %1384 = vmatprep.mubr.bf16.mxu0 0
        %1385 = vmatmul.mubr.bf16.gmra.mxu0 %v1324
        %v1386 = vpop.f32.mrf.mxu0
        %v1387 = vadd.f32 %v1295, %v1386
        %v1388 = vpop.f32.mrf.mxu0
        %v1389 = vpop.f32.mrf.mxu0
        %v1390 = vadd.f32 %v1295, %v1389
        %v1391 = vpop.f32.mrf.mxu0
        %1392 = vmatprep.mubr.bf16.mxu0 0
        %1393 = vmatmul.mubr.bf16.gmra.mxu0 %v1327
        %v1394 = vpop.f32.mrf.mxu0
        %v1395 = vadd.f32 %v1295, %v1394
        %v1396 = vpop.f32.mrf.mxu0
        %v1397 = vpop.f32.mrf.mxu0
        %v1398 = vadd.f32 %v1295, %v1397
        %v1399 = vpop.f32.mrf.mxu0
        %1400 = vmatprep.mubr.bf16.mxu0 0
        %1401 = vmatmul.mubr.bf16.gmra.mxu0 %v1330
        %v1402 = vpop.f32.mrf.mxu0
        %v1403 = vadd.f32 %v1295, %v1402
        %v1404 = vpop.f32.mrf.mxu0
        %v1405 = vpop.f32.mrf.mxu0
        %v1406 = vadd.f32 %v1295, %v1405
        %v1407 = vpop.f32.mrf.mxu0
        %1408 = vmatprep.mubr.bf16.mxu0 0
        %1409 = vmatmul.mubr.bf16.gmra.mxu0 %v1333
        %v1410 = vpop.f32.mrf.mxu0
        %v1411 = vadd.f32 %v1295, %v1410
        %v1412 = vpop.f32.mrf.mxu0
        %v1413 = vpop.f32.mrf.mxu0
        %v1414 = vadd.f32 %v1295, %v1413
        %v1415 = vpop.f32.mrf.mxu0
        %1416 = vmatprep.mubr.bf16.mxu0 0
        %1417 = vmatmul.mubr.bf16.gmra.mxu0 %v1336
        %v1418 = vpop.f32.mrf.mxu0
        %v1419 = vadd.f32 %v1295, %v1418
        %v1420 = vpop.f32.mrf.mxu0
        %v1421 = vpop.f32.mrf.mxu0
        %v1422 = vadd.f32 %v1295, %v1421
        %v1423 = vpop.f32.mrf.mxu0
        %1424 = vmatprep.mubr.bf16.mxu0 0
        %1425 = vmatmul.mubr.bf16.gmra.mxu0 %v1339
        %v1426 = vpop.f32.mrf.mxu0
        %v1427 = vadd.f32 %v1295, %v1426
        %v1428 = vpop.f32.mrf.mxu0
        %v1429 = vpop.f32.mrf.mxu0
        %v1430 = vadd.f32 %v1295, %v1429
        %v1431 = vpop.f32.mrf.mxu0
        %1432 = vmatprep.mubr.bf16.mxu0 0
        %1433 = vmatmul.mubr.bf16.gmra.mxu0 %v1342
        %v1434 = vpop.f32.mrf.mxu0
        %v1435 = vadd.f32 %v1295, %v1434
        %v1436 = vpop.f32.mrf.mxu0
        %v1437 = vpop.f32.mrf.mxu0
        %v1438 = vadd.f32 %v1295, %v1437
        %v1439 = vpop.f32.mrf.mxu0
        %1440 = vdwg.mxu0
        %v1441 = vld [vmem:[%s274] sm:$0xff]
        %1442 = vmatprep.subr.mxu0 0.0
        %1443 = vmatpush1.msra.mxu0 %v1438
        %1444 = vmatprep.subr.mxu0 0.0
        %1445 = vmatpush1.msra.mxu0 %v1435
        %1446 = vmatprep.subr.mxu0 0.0
        %1447 = vmatpush1.msra.mxu0 %v1430
        %1448 = vmatprep.subr.mxu0 0.0
        %1449 = vmatpush1.msra.mxu0 %v1427
        %1450 = vmatprep.subr.mxu0 0.0
        %1451 = vmatpush1.msra.mxu0 %v1422
        %1452 = vmatprep.subr.mxu0 0.0
        %1453 = vmatpush1.msra.mxu0 %v1419
        %1454 = vmatprep.subr.mxu0 0.0
        %1455 = vmatpush1.msra.mxu0 %v1414
        %1456 = vmatprep.subr.mxu0 0.0
        %1457 = vmatpush1.msra.mxu0 %v1411
        %1458 = vmatprep.subr.mxu0 0.0
        %1459 = vmatpush1.msra.mxu0 %v1406
        %1460 = vmatprep.subr.mxu0 0.0
        %1461 = vmatpush1.msra.mxu0 %v1403
        %1462 = vmatprep.subr.mxu0 0.0
        %1463 = vmatpush1.msra.mxu0 %v1398
        %1464 = vmatprep.subr.mxu0 0.0
        %1465 = vmatpush1.msra.mxu0 %v1395
        %1466 = vmatprep.subr.mxu0 0.0
        %1467 = vmatpush1.msra.mxu0 %v1390
        %1468 = vmatprep.subr.mxu0 0.0
        %1469 = vmatpush1.msra.mxu0 %v1387
        %1470 = vmatprep.subr.mxu0 0.0
        %1471 = vmatpush1.msra.mxu0 %v1382
        %1472 = vmatprep.subr.mxu0 0.0
        %1473 = vmatpush1.msra.mxu0 %v1379
        %1474 = vmatprep.subr.mxu0 0.0
        %1475 = vmatpush2.msra.mxu0 0.0
        %1476 = vmatprep.subr.mxu0 0.0
        %1477 = vmatpush2.msra.mxu0 0.0
        %1478 = vmatprep.subr.mxu0 0.0
        %1479 = vmatpush2.msra.mxu0 0.0
        %1480 = vmatprep.subr.mxu0 0.0
        %1481 = vmatpush2.msra.mxu0 0.0
        %1482 = vmatprep.subr.mxu0 0.0
        %1483 = vmatpush2.msra.mxu0 0.0
        %1484 = vmatprep.subr.mxu0 0.0
        %1485 = vmatpush2.msra.mxu0 0.0
        %1486 = vmatprep.subr.mxu0 0.0
        %1487 = vmatpush2.msra.mxu0 0.0
        %1488 = vmatprep.subr.mxu0 0.0
        %1489 = vmatpush2.msra.mxu0 0.0
        %1490 = vmatprep.subr.mxu0 0.0
        %1491 = vmatpush2.msra.mxu0 0.0
        %1492 = vmatprep.subr.mxu0 0.0
        %1493 = vmatpush2.msra.mxu0 0.0
        %1494 = vmatprep.subr.mxu0 0.0
        %1495 = vmatpush2.msra.mxu0 0.0
        %1496 = vmatprep.subr.mxu0 0.0
        %1497 = vmatpush2.msra.mxu0 0.0
        %1498 = vmatprep.subr.mxu0 0.0
        %1499 = vmatpush2.msra.mxu0 0.0
        %1500 = vmatprep.subr.mxu0 0.0
        %1501 = vmatpush2.msra.mxu0 0.0
        %1502 = vmatprep.subr.mxu0 0.0
        %1503 = vmatpush2.msra.mxu0 0.0
        %1504 = vmatprep.subr.mxu0 0.0
        %1505 = vmatpush2.msra.mxu0 0.0
        %1506 = vmatprep.mubr.f32.mxu0 0.0
        %1507 = vmatmul.mubr.f32.gmra.mxu0 %v1441
        %v1508 = vpop.f32.mrf.mxu0
        %v1509 = vadd.f32 0.0, %v1508
        %v1510 = vpop.f32.mrf.mxu0
        %1511 = vdwg.mxu0
        %v1513 = vcombine.high %v1509, %v1509
        %v1515 = vunpack.c.l.s4 1966171168
        %v1516 = vunpack.c.0.s8 %v1515
        %v1517 = vlaneseq
        %v1518 = vshrl.u32 %v1517, 7
        %v1519 = vsub.s32 %v1516, %v1518
        %v1520 = vrot.slane %v1509, %v1519
        %v1522 = vunpack.c.l.s4 1966171168
        %v1523 = vunpack.c.0.s8 %v1522
        %v1524 = vlaneseq
        %v1525 = vshrl.u32 %v1524, 7
        %v1526 = vsub.s32 %v1523, %v1525
        %v1527 = vrot.slane %v1513, %v1526
        %v1528 = vcombine.high %v1520, %v1520
        %v1529 = vcombine.high %v1527, %v1527
        %v1531 = vunpack.c.l.s4 1966171168
        %v1532 = vunpack.c.0.s8 %v1531
        %v1533 = vlaneseq
        %v1534 = vshrl.u32 %v1533, 7
        %v1535 = vsub.s32 %v1532, %v1534
        %v1536 = vrot.slane %v1520, %v1535
        %v1538 = vunpack.c.l.s4 1966171168
        %v1539 = vunpack.c.0.s8 %v1538
        %v1540 = vlaneseq
        %v1541 = vshrl.u32 %v1540, 7
        %v1542 = vsub.s32 %v1539, %v1541
        %v1543 = vrot.slane %v1527, %v1542
        %v1545 = vunpack.c.l.s4 1966171168
        %v1546 = vunpack.c.0.s8 %v1545
        %v1547 = vlaneseq
        %v1548 = vshrl.u32 %v1547, 7
        %v1549 = vsub.s32 %v1546, %v1548
        %v1550 = vrot.slane %v1528, %v1549
        %v1552 = vunpack.c.l.s4 1966171168
        %v1553 = vunpack.c.0.s8 %v1552
        %v1554 = vlaneseq
        %v1555 = vshrl.u32 %v1554, 7
        %v1556 = vsub.s32 %v1553, %v1555
        %v1557 = vrot.slane %v1529, %v1556
        %v1558 = vcombine.high %v1536, %v1536
        %v1559 = vcombine.high %v1543, %v1543
        %v1560 = vcombine.high %v1550, %v1550
        %v1561 = vcombine.high %v1557, %v1557
        %v1562 = vlaneseq
        %v1563 = vshrl.u32 %v1562, 7
        %v1564 = vsub.s32 0, %v1563
        %v1565 = vrot.slane %v1536, %v1564
        %v1566 = vlaneseq
        %v1567 = vshrl.u32 %v1566, 7
        %v1568 = vsub.s32 0, %v1567
        %v1569 = vrot.slane %v1550, %v1568
        %v1570 = vlaneseq
        %v1571 = vshrl.u32 %v1570, 7
        %v1572 = vsub.s32 0, %v1571
        %v1573 = vrot.slane %v1558, %v1572
        %v1574 = vlaneseq
        %v1575 = vshrl.u32 %v1574, 7
        %v1576 = vsub.s32 0, %v1575
        %v1577 = vrot.slane %v1560, %v1576
        %v1578 = vlaneseq
        %v1579 = vshrl.u32 %v1578, 7
        %v1580 = vsub.s32 0, %v1579
        %v1581 = vrot.slane %v1543, %v1580
        %v1582 = vlaneseq
        %v1583 = vshrl.u32 %v1582, 7
        %v1584 = vsub.s32 0, %v1583
        %v1585 = vrot.slane %v1557, %v1584
        %v1586 = vlaneseq
        %v1587 = vshrl.u32 %v1586, 7
        %v1588 = vsub.s32 0, %v1587
        %v1589 = vrot.slane %v1559, %v1588
        %v1590 = vlaneseq
        %v1591 = vshrl.u32 %v1590, 7
        %v1592 = vsub.s32 0, %v1591
        %v1593 = vrot.slane %v1561, %v1592
        %v1602 = vadd.f32 %v1379, %v1565
        %v1603 = vadd.f32 %v1382, %v1565
        %v1604 = vadd.f32 %v1387, %v1569
        %v1605 = vadd.f32 %v1390, %v1569
        %v1606 = vadd.f32 %v1395, %v1573
        %v1607 = vadd.f32 %v1398, %v1573
        %v1608 = vadd.f32 %v1403, %v1577
        %v1609 = vadd.f32 %v1406, %v1577
        %v1610 = vadd.f32 %v1411, %v1581
        %v1611 = vadd.f32 %v1414, %v1581
        %v1612 = vadd.f32 %v1419, %v1585
        %v1613 = vadd.f32 %v1422, %v1585
        %v1614 = vadd.f32 %v1427, %v1589
        %v1615 = vadd.f32 %v1430, %v1589
        %v1616 = vadd.f32 %v1435, %v1593
        %v1617 = vadd.f32 %v1438, %v1593
        %v1618 = vxor.u32 %v1602, 2147483648
        %v1619 = vxor.u32 %v1603, 2147483648
        %v1620 = vxor.u32 %v1604, 2147483648
        %v1621 = vxor.u32 %v1605, 2147483648
        %v1622 = vxor.u32 %v1606, 2147483648
        %v1623 = vxor.u32 %v1607, 2147483648
        %v1624 = vxor.u32 %v1608, 2147483648
        %v1625 = vxor.u32 %v1609, 2147483648
        %v1626 = vxor.u32 %v1610, 2147483648
        %v1627 = vxor.u32 %v1611, 2147483648
        %v1628 = vxor.u32 %v1612, 2147483648
        %v1629 = vxor.u32 %v1613, 2147483648
        %v1630 = vxor.u32 %v1614, 2147483648
        %v1631 = vxor.u32 %v1615, 2147483648
        %v1632 = vxor.u32 %v1616, 2147483648
        %v1633 = vxor.u32 %v1617, 2147483648
        %v1634 = vmul.f32 %v1618, 1.442695
        %v1635 = vpow.pop %v1634
        %v1636 = vmul.f32 %v1619, 1.442695
        %v1637 = vpow.pop %v1636
        %v1638 = vmul.f32 %v1620, 1.442695
        %v1639 = vpow.pop %v1638
        %v1640 = vmul.f32 %v1621, 1.442695
        %v1641 = vpow.pop %v1640
        %v1642 = vmul.f32 %v1622, 1.442695
        %v1643 = vpow.pop %v1642
        %v1644 = vmul.f32 %v1623, 1.442695
        %v1645 = vpow.pop %v1644
        %v1646 = vmul.f32 %v1624, 1.442695
        %v1647 = vpow.pop %v1646
        %v1648 = vmul.f32 %v1625, 1.442695
        %v1649 = vpow.pop %v1648
        %v1650 = vmul.f32 %v1626, 1.442695
        %v1651 = vpow.pop %v1650
        %v1652 = vmul.f32 %v1627, 1.442695
        %v1653 = vpow.pop %v1652
        %v1654 = vmul.f32 %v1628, 1.442695
        %v1655 = vpow.pop %v1654
        %v1656 = vmul.f32 %v1629, 1.442695
        %v1657 = vpow.pop %v1656
        %v1658 = vmul.f32 %v1630, 1.442695
        %v1659 = vpow.pop %v1658
        %v1660 = vmul.f32 %v1631, 1.442695
        %v1661 = vpow.pop %v1660
        %v1662 = vmul.f32 %v1632, 1.442695
        %v1663 = vpow.pop %v1662
        %v1664 = vmul.f32 %v1633, 1.442695
        %v1665 = vpow.pop %v1664
        %v1666 = vadd.f32 %v1635, 1.0
        %v1667 = vadd.f32 %v1637, 1.0
        %v1668 = vadd.f32 %v1639, 1.0
        %v1669 = vadd.f32 %v1641, 1.0
        %v1670 = vadd.f32 %v1643, 1.0
        %v1671 = vadd.f32 %v1645, 1.0
        %v1672 = vadd.f32 %v1647, 1.0
        %v1673 = vadd.f32 %v1649, 1.0
        %v1674 = vadd.f32 %v1651, 1.0
        %v1675 = vadd.f32 %v1653, 1.0
        %v1676 = vadd.f32 %v1655, 1.0
        %v1677 = vadd.f32 %v1657, 1.0
        %v1678 = vadd.f32 %v1659, 1.0
        %v1679 = vadd.f32 %v1661, 1.0
        %v1680 = vadd.f32 %v1663, 1.0
        %v1681 = vadd.f32 %v1665, 1.0
        %v1682 = vrcp.pop %v1666
        %v1683 = vmul.f32 1.0, %v1682
        %v1684 = vrcp.pop %v1667
        %v1685 = vmul.f32 1.0, %v1684
        %v1686 = vrcp.pop %v1668
        %v1687 = vmul.f32 1.0, %v1686
        %v1688 = vrcp.pop %v1669
        %v1689 = vmul.f32 1.0, %v1688
        %v1690 = vrcp.pop %v1670
        %v1691 = vmul.f32 1.0, %v1690
        %v1692 = vrcp.pop %v1671
        %v1693 = vmul.f32 1.0, %v1692
        %v1694 = vrcp.pop %v1672
        %v1695 = vmul.f32 1.0, %v1694
        %v1696 = vrcp.pop %v1673
        %v1697 = vmul.f32 1.0, %v1696
        %v1698 = vrcp.pop %v1674
        %v1699 = vmul.f32 1.0, %v1698
        %v1700 = vrcp.pop %v1675
        %v1701 = vmul.f32 1.0, %v1700
        %v1702 = vrcp.pop %v1676
        %v1703 = vmul.f32 1.0, %v1702
        %v1704 = vrcp.pop %v1677
        %v1705 = vmul.f32 1.0, %v1704
        %v1706 = vrcp.pop %v1678
        %v1707 = vmul.f32 1.0, %v1706
        %v1708 = vrcp.pop %v1679
        %v1709 = vmul.f32 1.0, %v1708
        %v1710 = vrcp.pop %v1680
        %v1711 = vmul.f32 1.0, %v1710
        %v1712 = vrcp.pop %v1681
        %v1713 = vmul.f32 1.0, %v1712
        %v1714 = vlaneseq
        %v1715 = vshrl.u32 %v1714, 7
        %v1716 = vsub.s32 0, %v1715
        %v1717 = vrot.slane %v315, %v1716
        %v1718 = vmul.f32 %v1683, %v1717
        %v1719 = vmul.f32 %v1685, %v1717
        %v1720 = vmul.f32 %v1687, %v1717
        %v1721 = vmul.f32 %v1689, %v1717
        %v1722 = vmul.f32 %v1691, %v1717
        %v1723 = vmul.f32 %v1693, %v1717
        %v1724 = vmul.f32 %v1695, %v1717
        %v1725 = vmul.f32 %v1697, %v1717
        %v1726 = vmul.f32 %v1699, %v1717
        %v1727 = vmul.f32 %v1701, %v1717
        %v1728 = vmul.f32 %v1703, %v1717
        %v1729 = vmul.f32 %v1705, %v1717
        %v1730 = vmul.f32 %v1707, %v1717
        %v1731 = vmul.f32 %v1709, %v1717
        %v1732 = vmul.f32 %v1711, %v1717
        %v1733 = vmul.f32 %v1713, %v1717
        %v1734 = vsel %vm733, %v1718, 0.0
        %1735 = vadd.xlane.f32.xlu0 %v1734
        %v1736 = vpop.xlane.xlu0 %1735
        %v1737 = vsel %vm733, %v1719, 0.0
        %1738 = vadd.xlane.f32.xlu0 %v1737
        %v1739 = vpop.xlane.xlu0 %1738
        %v1740 = vsel %vm733, %v1720, 0.0
        %1741 = vadd.xlane.f32.xlu0 %v1740
        %v1742 = vpop.xlane.xlu0 %1741
        %v1743 = vsel %vm733, %v1721, 0.0
        %1744 = vadd.xlane.f32.xlu0 %v1743
        %v1745 = vpop.xlane.xlu0 %1744
        %v1746 = vsel %vm733, %v1722, 0.0
        %1747 = vadd.xlane.f32.xlu0 %v1746
        %v1748 = vpop.xlane.xlu0 %1747
        %v1749 = vsel %vm733, %v1723, 0.0
        %1750 = vadd.xlane.f32.xlu0 %v1749
        %v1751 = vpop.xlane.xlu0 %1750
        %v1752 = vsel %vm733, %v1724, 0.0
        %1753 = vadd.xlane.f32.xlu0 %v1752
        %v1754 = vpop.xlane.xlu0 %1753
        %v1755 = vsel %vm733, %v1725, 0.0
        %1756 = vadd.xlane.f32.xlu0 %v1755
        %v1757 = vpop.xlane.xlu0 %1756
        %v1758 = vsel %vm733, %v1726, 0.0
        %1759 = vadd.xlane.f32.xlu0 %v1758
        %v1760 = vpop.xlane.xlu0 %1759
        %v1761 = vsel %vm733, %v1727, 0.0
        %1762 = vadd.xlane.f32.xlu0 %v1761
        %v1763 = vpop.xlane.xlu0 %1762
        %v1764 = vsel %vm733, %v1728, 0.0
        %1765 = vadd.xlane.f32.xlu0 %v1764
        %v1766 = vpop.xlane.xlu0 %1765
        %v1767 = vsel %vm733, %v1729, 0.0
        %1768 = vadd.xlane.f32.xlu0 %v1767
        %v1769 = vpop.xlane.xlu0 %1768
        %v1770 = vsel %vm733, %v1730, 0.0
        %1771 = vadd.xlane.f32.xlu0 %v1770
        %v1772 = vpop.xlane.xlu0 %1771
        %v1773 = vsel %vm733, %v1731, 0.0
        %1774 = vadd.xlane.f32.xlu0 %v1773
        %v1775 = vpop.xlane.xlu0 %1774
        %v1776 = vsel %vm733, %v1732, 0.0
        %1777 = vadd.xlane.f32.xlu0 %v1776
        %v1778 = vpop.xlane.xlu0 %1777
        %v1779 = vsel %vm733, %v1733, 0.0
        %1780 = vadd.xlane.f32.xlu0 %v1779
        %v1781 = vpop.xlane.xlu0 %1780
        %v1782 = vlaneseq
        %v1783 = vshrl.u32 %v1782, 7
        %v1784 = vsub.s32 0, %v1783
        %v1785 = vrot.slane %v316, %v1784
        %v1786 = vadd.f32 %v1736, %v1785
        %v1787 = vadd.f32 %v1739, %v1785
        %v1788 = vadd.f32 %v1742, %v1785
        %v1789 = vadd.f32 %v1745, %v1785
        %v1790 = vadd.f32 %v1748, %v1785
        %v1791 = vadd.f32 %v1751, %v1785
        %v1792 = vadd.f32 %v1754, %v1785
        %v1793 = vadd.f32 %v1757, %v1785
        %v1794 = vadd.f32 %v1760, %v1785
        %v1795 = vadd.f32 %v1763, %v1785
        %v1796 = vadd.f32 %v1766, %v1785
        %v1797 = vadd.f32 %v1769, %v1785
        %v1798 = vadd.f32 %v1772, %v1785
        %v1799 = vadd.f32 %v1775, %v1785
        %v1800 = vadd.f32 %v1778, %v1785
        %v1801 = vadd.f32 %v1781, %v1785
        %v1802 = vld [vmem:[%s279] sm:$0xff]
        %v1803 = vld [vmem:[%s279 + $0x8] sm:$0xff]
        %v1804 = vld [vmem:[%s279 + $0x10] sm:$0xff]
        %v1805 = vld [vmem:[%s279 + $0x18] sm:$0xff]
        %v1806 = vld [vmem:[%s279 + $0x20] sm:$0xff]
        %v1807 = vld [vmem:[%s279 + $0x28] sm:$0xff]
        %v1808 = vld [vmem:[%s279 + $0x30] sm:$0xff]
        %v1809 = vld [vmem:[%s279 + $0x38] sm:$0xff]
        %v1810 = vld [vmem:[%s279 + $0x40] sm:$0xff]
        %v1811 = vld [vmem:[%s279 + $0x48] sm:$0xff]
        %v1812 = vld [vmem:[%s279 + $0x50] sm:$0xff]
        %v1813 = vld [vmem:[%s279 + $0x58] sm:$0xff]
        %v1814 = vld [vmem:[%s279 + $0x60] sm:$0xff]
        %v1815 = vld [vmem:[%s279 + $0x68] sm:$0xff]
        %v1816 = vld [vmem:[%s279 + $0x70] sm:$0xff]
        %v1817 = vld [vmem:[%s279 + $0x78] sm:$0xff]
        %vm1818 = vcmp.gt.f32.partialorder %v1802, 0.0
        %vm1819 = vcmp.gt.f32.partialorder %v1803, 0.0
        %vm1820 = vcmp.gt.f32.partialorder %v1804, 0.0
        %vm1821 = vcmp.gt.f32.partialorder %v1805, 0.0
        %vm1822 = vcmp.gt.f32.partialorder %v1806, 0.0
        %vm1823 = vcmp.gt.f32.partialorder %v1807, 0.0
        %vm1824 = vcmp.gt.f32.partialorder %v1808, 0.0
        %vm1825 = vcmp.gt.f32.partialorder %v1809, 0.0
        %vm1826 = vcmp.gt.f32.partialorder %v1810, 0.0
        %vm1827 = vcmp.gt.f32.partialorder %v1811, 0.0
        %vm1828 = vcmp.gt.f32.partialorder %v1812, 0.0
        %vm1829 = vcmp.gt.f32.partialorder %v1813, 0.0
        %vm1830 = vcmp.gt.f32.partialorder %v1814, 0.0
        %vm1831 = vcmp.gt.f32.partialorder %v1815, 0.0
        %vm1832 = vcmp.gt.f32.partialorder %v1816, 0.0
        %vm1833 = vcmp.gt.f32.partialorder %v1817, 0.0
        %v1834 = vsel %vm1818, %v1786, -1e+30
        %v1835 = vsel %vm1819, %v1787, -1e+30
        %v1836 = vsel %vm1820, %v1788, -1e+30
        %v1837 = vsel %vm1821, %v1789, -1e+30
        %v1838 = vsel %vm1822, %v1790, -1e+30
        %v1839 = vsel %vm1823, %v1791, -1e+30
        %v1840 = vsel %vm1824, %v1792, -1e+30
        %v1841 = vsel %vm1825, %v1793, -1e+30
        %v1842 = vsel %vm1826, %v1794, -1e+30
        %v1843 = vsel %vm1827, %v1795, -1e+30
        %v1844 = vsel %vm1828, %v1796, -1e+30
        %v1845 = vsel %vm1829, %v1797, -1e+30
        %v1846 = vsel %vm1830, %v1798, -1e+30
        %v1847 = vsel %vm1831, %v1799, -1e+30
        %v1848 = vsel %vm1832, %v1800, -1e+30
        %v1849 = vsel %vm1833, %v1801, -1e+30
        %vm1850 = vcmask 7168
        %v1851 = vsel %vm1850, %v1834, -inf
        %v1852 = vsel %vm1850, %v1835, -inf
        %v1853 = vmax.f32 %v1851, %v1852
        %v1854 = vrot.slane %v1853, 4
        %v1855 = vmax.f32 %v1853, %v1854
        %v1856 = vrot.slane %v1855, 2
        %v1857 = vmax.f32 %v1855, %v1856
        %v1858 = vrot.slane %v1857, 1
        %v1859 = vmax.f32 %v1857, %v1858
        %v1860 = vsel %vm1850, %v1836, -inf
        %v1861 = vsel %vm1850, %v1837, -inf
        %v1862 = vmax.f32 %v1860, %v1861
        %v1863 = vrot.slane %v1862, 4
        %v1864 = vmax.f32 %v1862, %v1863
        %v1865 = vrot.slane %v1864, 2
        %v1866 = vmax.f32 %v1864, %v1865
        %v1867 = vrot.slane %v1866, 1
        %v1868 = vmax.f32 %v1866, %v1867
        %v1869 = vsel %vm1850, %v1838, -inf
        %v1870 = vsel %vm1850, %v1839, -inf
        %v1871 = vmax.f32 %v1869, %v1870
        %v1872 = vrot.slane %v1871, 4
        %v1873 = vmax.f32 %v1871, %v1872
        %v1874 = vrot.slane %v1873, 2
        %v1875 = vmax.f32 %v1873, %v1874
        %v1876 = vrot.slane %v1875, 1
        %v1877 = vmax.f32 %v1875, %v1876
        %v1878 = vsel %vm1850, %v1840, -inf
        %v1879 = vsel %vm1850, %v1841, -inf
        %v1880 = vmax.f32 %v1878, %v1879
        %v1881 = vrot.slane %v1880, 4
        %v1882 = vmax.f32 %v1880, %v1881
        %v1883 = vrot.slane %v1882, 2
        %v1884 = vmax.f32 %v1882, %v1883
        %v1885 = vrot.slane %v1884, 1
        %v1886 = vmax.f32 %v1884, %v1885
        %v1887 = vsel %vm1850, %v1842, -inf
        %v1888 = vsel %vm1850, %v1843, -inf
        %v1889 = vmax.f32 %v1887, %v1888
        %v1890 = vrot.slane %v1889, 4
        %v1891 = vmax.f32 %v1889, %v1890
        %v1892 = vrot.slane %v1891, 2
        %v1893 = vmax.f32 %v1891, %v1892
        %v1894 = vrot.slane %v1893, 1
        %v1895 = vmax.f32 %v1893, %v1894
        %v1896 = vsel %vm1850, %v1844, -inf
        %v1897 = vsel %vm1850, %v1845, -inf
        %v1898 = vmax.f32 %v1896, %v1897
        %v1899 = vrot.slane %v1898, 4
        %v1900 = vmax.f32 %v1898, %v1899
        %v1901 = vrot.slane %v1900, 2
        %v1902 = vmax.f32 %v1900, %v1901
        %v1903 = vrot.slane %v1902, 1
        %v1904 = vmax.f32 %v1902, %v1903
        %v1905 = vsel %vm1850, %v1846, -inf
        %v1906 = vsel %vm1850, %v1847, -inf
        %v1907 = vmax.f32 %v1905, %v1906
        %v1908 = vrot.slane %v1907, 4
        %v1909 = vmax.f32 %v1907, %v1908
        %v1910 = vrot.slane %v1909, 2
        %v1911 = vmax.f32 %v1909, %v1910
        %v1912 = vrot.slane %v1911, 1
        %v1913 = vmax.f32 %v1911, %v1912
        %v1914 = vsel %vm1850, %v1848, -inf
        %v1915 = vsel %vm1850, %v1849, -inf
        %v1916 = vmax.f32 %v1914, %v1915
        %v1917 = vrot.slane %v1916, 4
        %v1918 = vmax.f32 %v1916, %v1917
        %v1919 = vrot.slane %v1918, 2
        %v1920 = vmax.f32 %v1918, %v1919
        %v1921 = vrot.slane %v1920, 1
        %v1922 = vmax.f32 %v1920, %v1921
        %v1923 = vsub.f32 %v1786, %v1859
        %v1924 = vsub.f32 %v1787, %v1859
        %v1925 = vsub.f32 %v1788, %v1868
        %v1926 = vsub.f32 %v1789, %v1868
        %v1927 = vsub.f32 %v1790, %v1877
        %v1928 = vsub.f32 %v1791, %v1877
        %v1929 = vsub.f32 %v1792, %v1886
        %v1930 = vsub.f32 %v1793, %v1886
        %v1931 = vsub.f32 %v1794, %v1895
        %v1932 = vsub.f32 %v1795, %v1895
        %v1933 = vsub.f32 %v1796, %v1904
        %v1934 = vsub.f32 %v1797, %v1904
        %v1935 = vsub.f32 %v1798, %v1913
        %v1936 = vsub.f32 %v1799, %v1913
        %v1937 = vsub.f32 %v1800, %v1922
        %v1938 = vsub.f32 %v1801, %v1922
        %v1939 = vmin.f32 %v1923, 0.0
        %v1940 = vmin.f32 %v1924, 0.0
        %v1941 = vmin.f32 %v1925, 0.0
        %v1942 = vmin.f32 %v1926, 0.0
        %v1943 = vmin.f32 %v1927, 0.0
        %v1944 = vmin.f32 %v1928, 0.0
        %v1945 = vmin.f32 %v1929, 0.0
        %v1946 = vmin.f32 %v1930, 0.0
        %v1947 = vmin.f32 %v1931, 0.0
        %v1948 = vmin.f32 %v1932, 0.0
        %v1949 = vmin.f32 %v1933, 0.0
        %v1950 = vmin.f32 %v1934, 0.0
        %v1951 = vmin.f32 %v1935, 0.0
        %v1952 = vmin.f32 %v1936, 0.0
        %v1953 = vmin.f32 %v1937, 0.0
        %v1954 = vmin.f32 %v1938, 0.0
        %v1955 = vmul.f32 %v1939, 1.442695
        %v1956 = vpow.pop %v1955
        %v1957 = vmul.f32 %v1940, 1.442695
        %v1958 = vpow.pop %v1957
        %v1959 = vmul.f32 %v1941, 1.442695
        %v1960 = vpow.pop %v1959
        %v1961 = vmul.f32 %v1942, 1.442695
        %v1962 = vpow.pop %v1961
        %v1963 = vmul.f32 %v1943, 1.442695
        %v1964 = vpow.pop %v1963
        %v1965 = vmul.f32 %v1944, 1.442695
        %v1966 = vpow.pop %v1965
        %v1967 = vmul.f32 %v1945, 1.442695
        %v1968 = vpow.pop %v1967
        %v1969 = vmul.f32 %v1946, 1.442695
        %v1970 = vpow.pop %v1969
        %v1971 = vmul.f32 %v1947, 1.442695
        %v1972 = vpow.pop %v1971
        %v1973 = vmul.f32 %v1948, 1.442695
        %v1974 = vpow.pop %v1973
        %v1975 = vmul.f32 %v1949, 1.442695
        %v1976 = vpow.pop %v1975
        %v1977 = vmul.f32 %v1950, 1.442695
        %v1978 = vpow.pop %v1977
        %v1979 = vmul.f32 %v1951, 1.442695
        %v1980 = vpow.pop %v1979
        %v1981 = vmul.f32 %v1952, 1.442695
        %v1982 = vpow.pop %v1981
        %v1983 = vmul.f32 %v1953, 1.442695
        %v1984 = vpow.pop %v1983
        %v1985 = vmul.f32 %v1954, 1.442695
        %v1986 = vpow.pop %v1985
        %v1987 = vmul.f32 %v1956, %v1802
        %v1988 = vmul.f32 %v1958, %v1803
        %v1989 = vmul.f32 %v1960, %v1804
        %v1990 = vmul.f32 %v1962, %v1805
        %v1991 = vmul.f32 %v1964, %v1806
        %v1992 = vmul.f32 %v1966, %v1807
        %v1993 = vmul.f32 %v1968, %v1808
        %v1994 = vmul.f32 %v1970, %v1809
        %v1995 = vmul.f32 %v1972, %v1810
        %v1996 = vmul.f32 %v1974, %v1811
        %v1997 = vmul.f32 %v1976, %v1812
        %v1998 = vmul.f32 %v1978, %v1813
        %v1999 = vmul.f32 %v1980, %v1814
        %v2000 = vmul.f32 %v1982, %v1815
        %v2001 = vmul.f32 %v1984, %v1816
        %v2002 = vmul.f32 %v1986, %v1817
        %v2003 = vsel %vm1850, %v1987, 0.0
        %v2004 = vsel %vm1850, %v1988, 0.0
        %v2005 = vadd.f32 %v2003, %v2004
        %v2006 = vrot.slane %v2005, 4
        %v2007 = vadd.f32 %v2005, %v2006
        %v2008 = vrot.slane %v2007, 2
        %v2009 = vadd.f32 %v2007, %v2008
        %v2010 = vrot.slane %v2009, 1
        %v2011 = vadd.f32 %v2009, %v2010
        %v2012 = vsel %vm1850, %v1989, 0.0
        %v2013 = vsel %vm1850, %v1990, 0.0
        %v2014 = vadd.f32 %v2012, %v2013
        %v2015 = vrot.slane %v2014, 4
        %v2016 = vadd.f32 %v2014, %v2015
        %v2017 = vrot.slane %v2016, 2
        %v2018 = vadd.f32 %v2016, %v2017
        %v2019 = vrot.slane %v2018, 1
        %v2020 = vadd.f32 %v2018, %v2019
        %v2021 = vsel %vm1850, %v1991, 0.0
        %v2022 = vsel %vm1850, %v1992, 0.0
        %v2023 = vadd.f32 %v2021, %v2022
        %v2024 = vrot.slane %v2023, 4
        %v2025 = vadd.f32 %v2023, %v2024
        %v2026 = vrot.slane %v2025, 2
        %v2027 = vadd.f32 %v2025, %v2026
        %v2028 = vrot.slane %v2027, 1
        %v2029 = vadd.f32 %v2027, %v2028
        %v2030 = vsel %vm1850, %v1993, 0.0
        %v2031 = vsel %vm1850, %v1994, 0.0
        %v2032 = vadd.f32 %v2030, %v2031
        %v2033 = vrot.slane %v2032, 4
        %v2034 = vadd.f32 %v2032, %v2033
        %v2035 = vrot.slane %v2034, 2
        %v2036 = vadd.f32 %v2034, %v2035
        %v2037 = vrot.slane %v2036, 1
        %v2038 = vadd.f32 %v2036, %v2037
        %v2039 = vsel %vm1850, %v1995, 0.0
        %v2040 = vsel %vm1850, %v1996, 0.0
        %v2041 = vadd.f32 %v2039, %v2040
        %v2042 = vrot.slane %v2041, 4
        %v2043 = vadd.f32 %v2041, %v2042
        %v2044 = vrot.slane %v2043, 2
        %v2045 = vadd.f32 %v2043, %v2044
        %v2046 = vrot.slane %v2045, 1
        %v2047 = vadd.f32 %v2045, %v2046
        %v2048 = vsel %vm1850, %v1997, 0.0
        %v2049 = vsel %vm1850, %v1998, 0.0
        %v2050 = vadd.f32 %v2048, %v2049
        %v2051 = vrot.slane %v2050, 4
        %v2052 = vadd.f32 %v2050, %v2051
        %v2053 = vrot.slane %v2052, 2
        %v2054 = vadd.f32 %v2052, %v2053
        %v2055 = vrot.slane %v2054, 1
        %v2056 = vadd.f32 %v2054, %v2055
        %v2057 = vsel %vm1850, %v1999, 0.0
        %v2058 = vsel %vm1850, %v2000, 0.0
        %v2059 = vadd.f32 %v2057, %v2058
        %v2060 = vrot.slane %v2059, 4
        %v2061 = vadd.f32 %v2059, %v2060
        %v2062 = vrot.slane %v2061, 2
        %v2063 = vadd.f32 %v2061, %v2062
        %v2064 = vrot.slane %v2063, 1
        %v2065 = vadd.f32 %v2063, %v2064
        %v2066 = vsel %vm1850, %v2001, 0.0
        %v2067 = vsel %vm1850, %v2002, 0.0
        %v2068 = vadd.f32 %v2066, %v2067
        %v2069 = vrot.slane %v2068, 4
        %v2070 = vadd.f32 %v2068, %v2069
        %v2071 = vrot.slane %v2070, 2
        %v2072 = vadd.f32 %v2070, %v2071
        %v2073 = vrot.slane %v2072, 1
        %v2074 = vadd.f32 %v2072, %v2073
        %v2075 = vmax.f32 %v2011, 1e-30
        %v2076 = vmax.f32 %v2020, 1e-30
        %v2077 = vmax.f32 %v2029, 1e-30
        %v2078 = vmax.f32 %v2038, 1e-30
        %v2079 = vmax.f32 %v2047, 1e-30
        %v2080 = vmax.f32 %v2056, 1e-30
        %v2081 = vmax.f32 %v2065, 1e-30
        %v2082 = vmax.f32 %v2074, 1e-30
        %v2083 = vrcp.pop %v2075
        %v2084 = vmul.f32 %v1987, %v2083
        %v2085 = vmul.f32 %v1988, %v2083
        %v2086 = vrcp.pop %v2076
        %v2087 = vmul.f32 %v1989, %v2086
        %v2088 = vmul.f32 %v1990, %v2086
        %v2089 = vrcp.pop %v2077
        %v2090 = vmul.f32 %v1991, %v2089
        %v2091 = vmul.f32 %v1992, %v2089
        %v2092 = vrcp.pop %v2078
        %v2093 = vmul.f32 %v1993, %v2092
        %v2094 = vmul.f32 %v1994, %v2092
        %v2095 = vrcp.pop %v2079
        %v2096 = vmul.f32 %v1995, %v2095
        %v2097 = vmul.f32 %v1996, %v2095
        %v2098 = vrcp.pop %v2080
        %v2099 = vmul.f32 %v1997, %v2098
        %v2100 = vmul.f32 %v1998, %v2098
        %v2101 = vrcp.pop %v2081
        %v2102 = vmul.f32 %v1999, %v2101
        %v2103 = vmul.f32 %v2000, %v2101
        %v2104 = vrcp.pop %v2082
        %v2105 = vmul.f32 %v2001, %v2104
        %v2106 = vmul.f32 %v2002, %v2104
        %2108 = vset.pattern.permute.xlu0 0
        %2109 = vperm.xlu0 %2108, %v2084
        %v2110 = vpop.permute.xlu0 %2109
        %2113 = vset.pattern.permute.xlu0 0
        %2114 = vperm.xlu0 %2113, %v2085
        %v2115 = vpop.permute.xlu0 %2114
        %2118 = vset.pattern.permute.xlu0 0
        %2119 = vperm.xlu0 %2118, %v2087
        %v2120 = vpop.permute.xlu0 %2119
        %2123 = vset.pattern.permute.xlu0 0
        %2124 = vperm.xlu0 %2123, %v2088
        %v2125 = vpop.permute.xlu0 %2124
        %2128 = vset.pattern.permute.xlu0 0
        %2129 = vperm.xlu0 %2128, %v2090
        %v2130 = vpop.permute.xlu0 %2129
        %2133 = vset.pattern.permute.xlu0 0
        %2134 = vperm.xlu0 %2133, %v2091
        %v2135 = vpop.permute.xlu0 %2134
        %2138 = vset.pattern.permute.xlu0 0
        %2139 = vperm.xlu0 %2138, %v2093
        %v2140 = vpop.permute.xlu0 %2139
        %2143 = vset.pattern.permute.xlu0 0
        %2144 = vperm.xlu0 %2143, %v2094
        %v2145 = vpop.permute.xlu0 %2144
        %2148 = vset.pattern.permute.xlu0 0
        %2149 = vperm.xlu0 %2148, %v2096
        %v2150 = vpop.permute.xlu0 %2149
        %2153 = vset.pattern.permute.xlu0 0
        %2154 = vperm.xlu0 %2153, %v2097
        %v2155 = vpop.permute.xlu0 %2154
        %2158 = vset.pattern.permute.xlu0 0
        %2159 = vperm.xlu0 %2158, %v2099
        %v2160 = vpop.permute.xlu0 %2159
        %2163 = vset.pattern.permute.xlu0 0
        %2164 = vperm.xlu0 %2163, %v2100
        %v2165 = vpop.permute.xlu0 %2164
        %2168 = vset.pattern.permute.xlu0 0
        %2169 = vperm.xlu0 %2168, %v2102
        %v2170 = vpop.permute.xlu0 %2169
        %2173 = vset.pattern.permute.xlu0 0
        %2174 = vperm.xlu0 %2173, %v2103
        %v2175 = vpop.permute.xlu0 %2174
        %2178 = vset.pattern.permute.xlu0 0
        %2179 = vperm.xlu0 %2178, %v2105
        %v2180 = vpop.permute.xlu0 %2179
        %2183 = vset.pattern.permute.xlu0 0
        %2184 = vperm.xlu0 %2183, %v2106
        %v2185 = vpop.permute.xlu0 %2184
        %v2187 = vmul.f32 %v2110, %v1379
        %v2188 = vmul.f32 %v2115, %v1382
        %v2189 = vmul.f32 %v2120, %v1387
        %v2190 = vmul.f32 %v2125, %v1390
        %v2191 = vmul.f32 %v2130, %v1395
        %v2192 = vmul.f32 %v2135, %v1398
        %v2193 = vmul.f32 %v2140, %v1403
        %v2194 = vmul.f32 %v2145, %v1406
        %v2195 = vmul.f32 %v2150, %v1411
        %v2196 = vmul.f32 %v2155, %v1414
        %v2197 = vmul.f32 %v2160, %v1419
        %v2198 = vmul.f32 %v2165, %v1422
        %v2199 = vmul.f32 %v2170, %v1427
        %v2200 = vmul.f32 %v2175, %v1430
        %v2201 = vmul.f32 %v2180, %v1435
        %v2202 = vmul.f32 %v2185, %v1438
        %v2203 = vsel %vm733, %v2187, 0.0
        %v2204 = vsel %vm733, %v2188, 0.0
        %v2205 = vadd.f32 %v2203, %v2204
        %v2206 = vrot.slane %v2205, 4
        %v2207 = vadd.f32 %v2205, %v2206
        %v2208 = vrot.slane %v2207, 2
        %v2209 = vadd.f32 %v2207, %v2208
        %v2210 = vrot.slane %v2209, 1
        %v2211 = vadd.f32 %v2209, %v2210
        %v2212 = vsel %vm733, %v2189, 0.0
        %v2213 = vsel %vm733, %v2190, 0.0
        %v2214 = vadd.f32 %v2212, %v2213
        %v2215 = vrot.slane %v2214, 4
        %v2216 = vadd.f32 %v2214, %v2215
        %v2217 = vrot.slane %v2216, 2
        %v2218 = vadd.f32 %v2216, %v2217
        %v2219 = vrot.slane %v2218, 1
        %v2220 = vadd.f32 %v2218, %v2219
        %v2221 = vsel %vm733, %v2191, 0.0
        %v2222 = vsel %vm733, %v2192, 0.0
        %v2223 = vadd.f32 %v2221, %v2222
        %v2224 = vrot.slane %v2223, 4
        %v2225 = vadd.f32 %v2223, %v2224
        %v2226 = vrot.slane %v2225, 2
        %v2227 = vadd.f32 %v2225, %v2226
        %v2228 = vrot.slane %v2227, 1
        %v2229 = vadd.f32 %v2227, %v2228
        %v2230 = vsel %vm733, %v2193, 0.0
        %v2231 = vsel %vm733, %v2194, 0.0
        %v2232 = vadd.f32 %v2230, %v2231
        %v2233 = vrot.slane %v2232, 4
        %v2234 = vadd.f32 %v2232, %v2233
        %v2235 = vrot.slane %v2234, 2
        %v2236 = vadd.f32 %v2234, %v2235
        %v2237 = vrot.slane %v2236, 1
        %v2238 = vadd.f32 %v2236, %v2237
        %v2239 = vsel %vm733, %v2195, 0.0
        %v2240 = vsel %vm733, %v2196, 0.0
        %v2241 = vadd.f32 %v2239, %v2240
        %v2242 = vrot.slane %v2241, 4
        %v2243 = vadd.f32 %v2241, %v2242
        %v2244 = vrot.slane %v2243, 2
        %v2245 = vadd.f32 %v2243, %v2244
        %v2246 = vrot.slane %v2245, 1
        %v2247 = vadd.f32 %v2245, %v2246
        %v2248 = vsel %vm733, %v2197, 0.0
        %v2249 = vsel %vm733, %v2198, 0.0
        %v2250 = vadd.f32 %v2248, %v2249
        %v2251 = vrot.slane %v2250, 4
        %v2252 = vadd.f32 %v2250, %v2251
        %v2253 = vrot.slane %v2252, 2
        %v2254 = vadd.f32 %v2252, %v2253
        %v2255 = vrot.slane %v2254, 1
        %v2256 = vadd.f32 %v2254, %v2255
        %v2257 = vsel %vm733, %v2199, 0.0
        %v2258 = vsel %vm733, %v2200, 0.0
        %v2259 = vadd.f32 %v2257, %v2258
        %v2260 = vrot.slane %v2259, 4
        %v2261 = vadd.f32 %v2259, %v2260
        %v2262 = vrot.slane %v2261, 2
        %v2263 = vadd.f32 %v2261, %v2262
        %v2264 = vrot.slane %v2263, 1
        %v2265 = vadd.f32 %v2263, %v2264
        %v2266 = vsel %vm733, %v2201, 0.0
        %v2267 = vsel %vm733, %v2202, 0.0
        %v2268 = vadd.f32 %v2266, %v2267
        %v2269 = vrot.slane %v2268, 4
        %v2270 = vadd.f32 %v2268, %v2269
        %v2271 = vrot.slane %v2270, 2
        %v2272 = vadd.f32 %v2270, %v2271
        %v2273 = vrot.slane %v2272, 1
        %v2274 = vadd.f32 %v2272, %v2273
        %v2275 = vlaneseq
        %v2276 = vshrl.u32 %v2275, 7
        %v2277 = vsub.s32 0, %v2276
        %v2278 = vrot.slane %v317, %v2277
        %vm2287 = vcmask 1041409
        %v2288 = vsel %vm2287, %v2220, %v2211
        %vm2289 = vcmask 1042434
        %v2290 = vsel %vm2289, %v2229, %v2288
        %vm2291 = vcmask 1043459
        %v2292 = vsel %vm2291, %v2238, %v2290
        %vm2293 = vcmask 1044484
        %v2294 = vsel %vm2293, %v2247, %v2292
        %vm2295 = vcmask 1045509
        %v2296 = vsel %vm2295, %v2256, %v2294
        %vm2297 = vcmask 1046534
        %v2298 = vsel %vm2297, %v2265, %v2296
        %vm2299 = vcmask 1047559
        %v2300 = vsel %vm2299, %v2274, %v2298
        %v2301 = vsel %vm733, %v2300, 0
        %2303 = vmatprep.subr.mxu0 0.0
        %2304 = vmatpush1.msra.mxu0 0.0
        %2305 = vmatprep.subr.mxu0 0.0
        %2306 = vmatpush1.msra.mxu0 0.0
        %2307 = vmatprep.subr.mxu0 0.0
        %2308 = vmatpush1.msra.mxu0 0.0
        %2309 = vmatprep.subr.mxu0 0.0
        %2310 = vmatpush1.msra.mxu0 0.0
        %2311 = vmatprep.subr.mxu0 0.0
        %2312 = vmatpush1.msra.mxu0 0.0
        %2313 = vmatprep.subr.mxu0 0.0
        %2314 = vmatpush1.msra.mxu0 0.0
        %2315 = vmatprep.subr.mxu0 0.0
        %2316 = vmatpush1.msra.mxu0 0.0
        %2317 = vmatprep.subr.mxu0 0.0
        %2318 = vmatpush1.msra.mxu0 0.0
        %2319 = vmatprep.subr.mxu0 0.0
        %2320 = vmatpush1.msra.mxu0 0.0
        %2321 = vmatprep.subr.mxu0 0.0
        %2322 = vmatpush1.msra.mxu0 0.0
        %2323 = vmatprep.subr.mxu0 0.0
        %2324 = vmatpush1.msra.mxu0 0.0
        %2325 = vmatprep.subr.mxu0 0.0
        %2326 = vmatpush1.msra.mxu0 0.0
        %2327 = vmatprep.subr.mxu0 0.0
        %2328 = vmatpush1.msra.mxu0 %v311
        %2329 = vmatprep.subr.mxu0 0.0
        %2330 = vmatpush1.msra.mxu0 %v310
        %2331 = vmatprep.subr.mxu0 0.0
        %2332 = vmatpush1.msra.mxu0 %v309
        %2333 = vmatprep.subr.mxu0 0.0
        %2334 = vmatpush1.msra.mxu0 %v308
        %2335 = vmatprep.subr.mxu0 0.0
        %2336 = vmatpush2.msra.mxu0 0.0
        %2337 = vmatprep.subr.mxu0 0.0
        %2338 = vmatpush2.msra.mxu0 0.0
        %2339 = vmatprep.subr.mxu0 0.0
        %2340 = vmatpush2.msra.mxu0 0.0
        %2341 = vmatprep.subr.mxu0 0.0
        %2342 = vmatpush2.msra.mxu0 0.0
        %2343 = vmatprep.subr.mxu0 0.0
        %2344 = vmatpush2.msra.mxu0 0.0
        %2345 = vmatprep.subr.mxu0 0.0
        %2346 = vmatpush2.msra.mxu0 0.0
        %2347 = vmatprep.subr.mxu0 0.0
        %2348 = vmatpush2.msra.mxu0 0.0
        %2349 = vmatprep.subr.mxu0 0.0
        %2350 = vmatpush2.msra.mxu0 0.0
        %2351 = vmatprep.subr.mxu0 0.0
        %2352 = vmatpush2.msra.mxu0 0.0
        %2353 = vmatprep.subr.mxu0 0.0
        %2354 = vmatpush2.msra.mxu0 0.0
        %2355 = vmatprep.subr.mxu0 0.0
        %2356 = vmatpush2.msra.mxu0 0.0
        %2357 = vmatprep.subr.mxu0 0.0
        %2358 = vmatpush2.msra.mxu0 0.0
        %2359 = vmatprep.subr.mxu0 0.0
        %2360 = vmatpush2.msra.mxu0 0.0
        %2361 = vmatprep.subr.mxu0 0.0
        %2362 = vmatpush2.msra.mxu0 0.0
        %2363 = vmatprep.subr.mxu0 0.0
        %2364 = vmatpush2.msra.mxu0 0.0
        %2365 = vmatprep.subr.mxu0 0.0
        %2366 = vmatpush2.msra.mxu0 0.0
        %2367 = vmatprep.mubr.f32.mxu0 0.0
        %2368 = vmatmul.mubr.f32.gmra.mxu0 %v2301
        %v2369 = vpop.f32.mrf.mxu0
        %v2370 = vadd.f32 %v2278, %v2369
        %v2371 = vpop.f32.mrf.mxu0
        %2372 = vdwg.mxu0
        %2373 = vst [vmem:[%s260] sm:$0xff] %v2370
        %s2374 = sand.u32 %s152, 1
        %s2375 = scalar_lea.sflag [#allocation3], %s2374
        %s2376 = sand.u32 %s152, 1
        %s2377 = smul.addr %s2376, 8
        %s2378 = scalar_lea.vmem [#allocation2], %s2377
        // Predicated region
        $region41: #{tpu_custom_call.1} parent=39 // pred_check
          %p2379 = pneg %p162
        $region42: #{tpu_custom_call.1} parent=39 // pred_check_branch
          %2381 = sbr.rel (%p2379) target = $region44
        $region43: #{tpu_custom_call.1} parent=39 // pred_region
          %s2383 = ssub.s32 128, 128
          %2384 = vsyncadd %s2375, %s2383
          %s2385 = smul.addr %s19, 128
          %s2386 = scalar_lea.hbm %s5, %s2385
          %s2388 = sshll.u32 %s2378, 4
          %s2389 = int_to_ptr.vmem [resolvable:$true] %s2388
          %2391 = dma.vmem_to_hbm [thread:$0]  %s2389, 128, %s2386, %s2375
        $region44: #{tpu_custom_call.1} parent=39 // pred_fallthru
          _
      $region40: #{tpu_custom_call.1} parent=5 // pred_fallthru
        _
      %p2392 = scmp.le.s32.totalorder 2, %s14
      // Predicated region
      $region45: #{tpu_custom_call.1} parent=5 // pred_check
        %p2393 = pneg %p2392
      $region46: #{tpu_custom_call.1} parent=5 // pred_check_branch
        %2395 = sbr.rel (%p2393) target = $region48
      $region47: #{tpu_custom_call.1} parent=5 // pred_region
        %s2396 = ssub.s32 %s14, 2
        // Predicated region
        $region49: #{tpu_custom_call.1} parent=47 // pred_check
          %p2397 = pneg %p168
        $region50: #{tpu_custom_call.1} parent=47 // pred_check_branch
          %2399 = sbr.rel (%p2397) target = $region52
        $region51: #{tpu_custom_call.1} parent=47 // pred_region
          %s2400 = sand.u32 %s153, 1
          %s2401 = scalar_lea.sflag [#allocation3], %s2400
          %s2402 = sand.u32 %s153, 1
          %s2403 = smul.addr %s2402, 8
          %s2404 = scalar_lea.vmem [#allocation2], %s2403
          %2405 = dma.done %s2401, 128
        $region52: #{tpu_custom_call.1} parent=47 // pred_fallthru
          _
      $region48: #{tpu_custom_call.1} parent=5 // pred_fallthru
        _
    $region6: #{tpu_custom_call.1} parent=1 // loop_footer
      %s18 = sadd.s32 1, %s14
    $region7: #{tpu_custom_call.1} parent=1 // loop_footer_branch
      %13 = sbr.rel target = $region3
    $region8: #{tpu_custom_call.1} parent=1 // loop_exit
      _
    %2406 = vsyncpa [#allocation3], 1
    %s2407 = scalar_lea.sflag [#allocation3], 1
    %2408 = vsyncpa %s2407, 1

</llo_original>
